<compile_context>
chip_gen: v7x
topology: tpu7x:2x2x1
jax: 0.10.0
libtpu: 0.0.40
codegen_flags: <defaults>
</compile_context>

<pallas_src>
import jax
import jax.numpy as jnp
import numpy as np
from jax.experimental import pallas as pl
from jax.experimental.pallas import tpu as pltpu


def _make_kernel(num_layers, BP, T, F, Hp):
    L = num_layers

    def kernel(*refs):
        x_ref = refs[0]                                   # (T, BP, F) bf16, time-major
        w_ih0_ref, w_hh0_ref, b0_ref = refs[1], refs[2], refs[3]
        idx = 4
        deep_refs = []
        for _ in range(L - 1):
            deep_refs.append((refs[idx], refs[idx + 1], refs[idx + 2]))
            idx += 3
        fc_w_ref, fc_b_ref = refs[idx], refs[idx + 1]
        out_ref = refs[idx + 2]

        # ---- Hoisted layer-0 input projection for ALL timesteps (time-major) ----
        x2 = x_ref[...].reshape(T * BP, F)                # leading-dim collapse only
        xw0 = jnp.dot(x2, w_ih0_ref[...], preferred_element_type=jnp.float32)
        xw0 = xw0.reshape(T, BP, Hp) + b0_ref[...]        # bias folded in once (f32)

        # ---- Hoist invariant weight loads / bias broadcasts out of the loop ----
        w_hh0 = w_hh0_ref[...]                            # bf16 (Hp, Hp)
        deep_w = [(wi_ref[...], wh_ref[...]) for (wi_ref, wh_ref, _) in deep_refs]
        deep_b = [jnp.broadcast_to(b_ref[...], (BP, Hp)) for (_, _, b_ref) in deep_refs]

        # ---- Recurrence: hidden state carried in vregs (f32), matmuls in bf16 ----
        h = [jnp.zeros((BP, Hp), jnp.float32) for _ in range(L)]

        # Wavefront over the (t, layer) nest: diagonal d emits layer l at t = d - l.
        # Points on one diagonal are data-independent, so adjacent MXU pushes come
        # from independent chains (serial depth ~ T + L - 1 instead of T * L).
        # Layers are processed in DECREASING l order so layer l reads layer l-1's
        # output for time t before it is overwritten with time t+1.
        for d in range(T + L - 1):
            for l in range(L - 1, -1, -1):
                t = d - l
                if 0 <= t < T:
                    if l == 0:
                        pre = xw0[t] + jnp.dot(
                            h[0].astype(jnp.bfloat16), w_hh0,
                            preferred_element_type=jnp.float32)
                    else:
                        w_ih_l, w_hh_l = deep_w[l - 1]
                        pre = (
                            jnp.dot(h[l - 1].astype(jnp.bfloat16), w_ih_l,
                                    preferred_element_type=jnp.float32)
                            + jnp.dot(h[l].astype(jnp.bfloat16), w_hh_l,
                                      preferred_element_type=jnp.float32)
                            + deep_b[l - 1])
                    h[l] = jnp.tanh(pre)

        # ---- FC head + sigmoid on the last hidden state (lane-dense output) ----
        logits = (jnp.dot(h[L - 1].astype(jnp.bfloat16), fc_w_ref[...],
                          preferred_element_type=jnp.float32) + fc_b_ref[...])
        out_ref[...] = jax.nn.sigmoid(logits)

    return kernel


@jax.jit
def rnn_forward_pallas(x, layer_params, fc_w, fc_b):
    """x: (B, T, F) float32, batch-first (PyTorch layout).
    layer_params: list of (w_ih (in, H), w_hh (H, H), b (1, H)) with b = b_ih + b_hh.
    fc_w: (H, O), fc_b: (1, O). Returns (B, O)."""
    B, T, F = x.shape
    num_layers = len(layer_params)
    H = layer_params[0][1].shape[0]
    O = fc_w.shape[1]

    Hp = ((H + 127) // 128) * 128          # pad hidden to full 128-lane tiles
    BP = ((B + 7) // 8) * 8                # pad batch to full 8-sublane tiles
    OPAD = ((O + 127) // 128) * 128        # lane-dense output slab

    f32, bf16 = jnp.float32, jnp.bfloat16

    # Time-major, batch-padded, bf16 input (single wrapper-side transpose).
    x_tm = jnp.zeros((T, BP, F), bf16).at[:, :B, :].set(
        jnp.transpose(x, (1, 0, 2)).astype(bf16))

    def pad_w(w, rows, cols):
        # Zero-padded rows/cols keep padded hidden lanes exactly 0 through tanh.
        return jnp.zeros((rows, cols), bf16).at[:w.shape[0], :w.shape[1]].set(
            w.astype(bf16))

    def pad_b(b, cols):
        return jnp.zeros((1, cols), f32).at[:, :b.shape[1]].set(b.astype(f32))

    w_ih0, w_hh0, b0 = layer_params[0]
    inputs = [x_tm,
              pad_w(w_ih0, F, Hp),         # (F, Hp)
              pad_w(w_hh0, Hp, Hp),        # (Hp, Hp)
              pad_b(b0, Hp)]
    for (w_ih, w_hh, b) in layer_params[1:]:
        inputs += [pad_w(w_ih, Hp, Hp), pad_w(w_hh, Hp, Hp), pad_b(b, Hp)]
    inputs += [pad_w(fc_w, Hp, OPAD), pad_b(fc_b, OPAD)]

    L = num_layers
    flops = (2 * T * BP * F * Hp                       # hoisted input projection
             + T * 2 * BP * Hp * Hp                    # layer-0 recurrence
             + (L - 1) * T * 2 * (2 * BP * Hp * Hp)    # deep layers: 2 matmuls/step
             + 2 * BP * Hp * OPAD)                     # FC head
    transcendentals = T * L * BP * Hp + BP * OPAD      # tanh + sigmoid
    bytes_accessed = (sum(int(np.prod(a.shape)) * a.dtype.itemsize for a in inputs)
                      + BP * OPAD * 4)

    out = pl.pallas_call(
        _make_kernel(num_layers, BP, T, F, Hp),
        out_shape=jax.ShapeDtypeStruct((BP, OPAD), jnp.float32),
        # Single invocation (no grid): whole (tiny) arrays live in VMEM.
        in_specs=[pl.BlockSpec(memory_space=pltpu.MemorySpace.VMEM)] * len(inputs),
        out_specs=pl.BlockSpec(memory_space=pltpu.MemorySpace.VMEM),
        compiler_params=pltpu.CompilerParams(vmem_limit_bytes=8 * 1024 * 1024),
        cost_estimate=pl.CostEstimate(flops=int(flops),
                                      transcendentals=int(transcendentals),
                                      bytes_accessed=int(bytes_accessed)),
    )(*inputs)
    return out[:B, :O]


def rnn_forward_reference(x, layer_params, fc_w, fc_b):
    """Pure-JAX f32 reference matching torch.nn.RNN(batch_first=True) + fc + sigmoid."""
    B = x.shape[0]
    seq = jnp.transpose(x, (1, 0, 2))  # (T, B, F)
    for (w_ih, w_hh, b) in layer_params:
        H = w_hh.shape[0]

        def step(h_prev, x_t):
            h_new = jnp.tanh(x_t @ w_ih + h_prev @ w_hh + b[0])
            return h_new, h_new

        _, outs = jax.lax.scan(step, jnp.zeros((B, H), jnp.float32), seq)
        seq = outs  # (T, B, H)
    last = seq[-1]  # (B, H)
    return jax.nn.sigmoid(last @ fc_w + fc_b[0])


if __name__ == "__main__":
    # Small shapes consistent with the module's forward:
    # feature_size=4, hidden_size=32, num_layers=2, output_size=1, batch=2, seq=8
    B, T, F, H, NUM_LAYERS, O = 2, 8, 4, 32, 2, 1

    key = jax.random.PRNGKey(0)
    keys = jax.random.split(key, 1 + 3 * NUM_LAYERS + 2)
    k = 1.0 / np.sqrt(H)

    x = jax.random.normal(keys[0], (B, T, F), dtype=jnp.float32)

    layer_params = []
    ki = 1
    in_size = F
    for l in range(NUM_LAYERS):
        # PyTorch stores weight_ih_l as (H, in); we pre-transpose to (in, H).
        w_ih = jax.random.uniform(keys[ki], (in_size, H), jnp.float32, -k, k)
        w_hh = jax.random.uniform(keys[ki + 1], (H, H), jnp.float32, -k, k)
        # Combined bias b_ih + b_hh, kept 2D (1, H) for TPU-friendly layout.
        b = jax.random.uniform(keys[ki + 2], (1, H), jnp.float32, -2 * k, 2 * k)
        layer_params.append((w_ih, w_hh, b))
        ki += 3
        in_size = H

    fc_w = jax.random.uniform(keys[ki], (H, O), jnp.float32, -k, k)
    fc_b = jax.random.uniform(keys[ki + 1], (1, O), jnp.float32, -k, k)

    out = rnn_forward_pallas(x, layer_params, fc_w, fc_b)
    out = jax.block_until_ready(out)

    ref = rnn_forward_reference(x, layer_params, fc_w, fc_b)
    ref = jax.block_until_ready(ref)

    assert out.shape == (B, O)
    # bf16 MXU inputs (f32 accumulation / elementwise) -> loosened tolerance.
    np.testing.assert_allclose(np.asarray(out), np.asarray(ref), atol=2e-2, rtol=2e-2)

    print("KERNEL_OK")
</pallas_src>

<mosaic_0001>
module attributes {stable_mosaic.version = 11 : i64} {
  func.func @kernel(%arg0: memref<8x8x4xbf16, #tpu.memory_space<vmem>>, %arg1: memref<4x128xbf16, #tpu.memory_space<vmem>>, %arg2: memref<128x128xbf16, #tpu.memory_space<vmem>>, %arg3: memref<1x128xf32, #tpu.memory_space<vmem>>, %arg4: memref<128x128xbf16, #tpu.memory_space<vmem>>, %arg5: memref<128x128xbf16, #tpu.memory_space<vmem>>, %arg6: memref<1x128xf32, #tpu.memory_space<vmem>>, %arg7: memref<128x128xbf16, #tpu.memory_space<vmem>>, %arg8: memref<1x128xf32, #tpu.memory_space<vmem>>, %arg9: memref<8x128xf32, #tpu.memory_space<vmem>>) attributes {dimension_semantics = [], scalar_prefetch = 0 : i64, scratch_operands = 0 : i64, tpu.core_type = #tpu.core_type<tc>} {
    %c0 = arith.constant 0 : index
    %c0_0 = arith.constant 0 : index
    %c0_1 = arith.constant 0 : index
    %0 = vector.load %arg0[%c0, %c0_0, %c0_1] : memref<8x8x4xbf16, #tpu.memory_space<vmem>>, vector<8x8x4xbf16>
    %1 = vector.shape_cast %0 : vector<8x8x4xbf16> to vector<64x4xbf16>
    %c0_2 = arith.constant 0 : index
    %c0_3 = arith.constant 0 : index
    %2 = vector.load %arg1[%c0_2, %c0_3] : memref<4x128xbf16, #tpu.memory_space<vmem>>, vector<4x128xbf16>
    %cst = arith.constant dense<0.000000e+00> : vector<64x128xf32>
    %3 = tpu.matmul %1, %2, %cst {dimension_numbers = #tpu.dot_dimension_numbers<[1], [0], [0], [1], [0, 0, 1, 1], [], []>} : vector<64x4xbf16>, vector<4x128xbf16>, vector<64x128xf32> -> vector<64x128xf32>
    %4 = vector.shape_cast %3 : vector<64x128xf32> to vector<8x8x128xf32>
    %c0_4 = arith.constant 0 : index
    %c0_5 = arith.constant 0 : index
    %5 = vector.load %arg3[%c0_4, %c0_5] : memref<1x128xf32, #tpu.memory_space<vmem>>, vector<1x128xf32>
    %6 = vector.shape_cast %5 : vector<1x128xf32> to vector<1x1x128xf32>
    %7 = vector.broadcast %6 : vector<1x1x128xf32> to vector<8x8x128xf32>
    %8 = arith.addf %4, %7 : vector<8x8x128xf32>
    %c0_6 = arith.constant 0 : index
    %c0_7 = arith.constant 0 : index
    %9 = vector.load %arg2[%c0_6, %c0_7] : memref<128x128xbf16, #tpu.memory_space<vmem>>, vector<128x128xbf16>
    %c0_8 = arith.constant 0 : index
    %c0_9 = arith.constant 0 : index
    %10 = vector.load %arg4[%c0_8, %c0_9] : memref<128x128xbf16, #tpu.memory_space<vmem>>, vector<128x128xbf16>
    %c0_10 = arith.constant 0 : index
    %c0_11 = arith.constant 0 : index
    %11 = vector.load %arg5[%c0_10, %c0_11] : memref<128x128xbf16, #tpu.memory_space<vmem>>, vector<128x128xbf16>
    %c0_12 = arith.constant 0 : index
    %c0_13 = arith.constant 0 : index
    %12 = vector.load %arg6[%c0_12, %c0_13] : memref<1x128xf32, #tpu.memory_space<vmem>>, vector<1x128xf32>
    %13 = vector.shape_cast %12 : vector<1x128xf32> to vector<1x128xf32>
    %14 = vector.broadcast %13 : vector<1x128xf32> to vector<8x128xf32>
    %cst_14 = arith.constant 0.000000e+00 : f32
    %15 = vector.broadcast %cst_14 : f32 to vector<8x128xf32>
    %cst_15 = arith.constant 0.000000e+00 : f32
    %16 = vector.broadcast %cst_15 : f32 to vector<8x128xf32>
    %17 = vector.extract_strided_slice %8 {offsets = [0, 0, 0], sizes = [1, 8, 128], strides = [1, 1, 1]} : vector<8x8x128xf32> to vector<1x8x128xf32>
    %18 = vector.shape_cast %17 : vector<1x8x128xf32> to vector<8x128xf32>
    %19 = arith.truncf %15 : vector<8x128xf32> to vector<8x128xbf16>
    %cst_16 = arith.constant dense<0.000000e+00> : vector<8x128xf32>
    %20 = tpu.matmul %19, %9, %cst_16 {dimension_numbers = #tpu.dot_dimension_numbers<[1], [0], [0], [1], [0, 0, 1, 1], [], []>} : vector<8x128xbf16>, vector<128x128xbf16>, vector<8x128xf32> -> vector<8x128xf32>
    %21 = arith.addf %18, %20 : vector<8x128xf32>
    %22 = math.tanh %21 : vector<8x128xf32>
    %23 = arith.truncf %22 : vector<8x128xf32> to vector<8x128xbf16>
    %cst_17 = arith.constant dense<0.000000e+00> : vector<8x128xf32>
    %24 = tpu.matmul %23, %10, %cst_17 {dimension_numbers = #tpu.dot_dimension_numbers<[1], [0], [0], [1], [0, 0, 1, 1], [], []>} : vector<8x128xbf16>, vector<128x128xbf16>, vector<8x128xf32> -> vector<8x128xf32>
    %25 = arith.truncf %16 : vector<8x128xf32> to vector<8x128xbf16>
    %cst_18 = arith.constant dense<0.000000e+00> : vector<8x128xf32>
    %26 = tpu.matmul %25, %11, %cst_18 {dimension_numbers = #tpu.dot_dimension_numbers<[1], [0], [0], [1], [0, 0, 1, 1], [], []>} : vector<8x128xbf16>, vector<128x128xbf16>, vector<8x128xf32> -> vector<8x128xf32>
    %27 = arith.addf %24, %26 : vector<8x128xf32>
    %28 = arith.addf %27, %14 : vector<8x128xf32>
    %29 = math.tanh %28 : vector<8x128xf32>
    %30 = vector.extract_strided_slice %8 {offsets = [1, 0, 0], sizes = [1, 8, 128], strides = [1, 1, 1]} : vector<8x8x128xf32> to vector<1x8x128xf32>
    %31 = vector.shape_cast %30 : vector<1x8x128xf32> to vector<8x128xf32>
    %32 = arith.truncf %22 : vector<8x128xf32> to vector<8x128xbf16>
    %cst_19 = arith.constant dense<0.000000e+00> : vector<8x128xf32>
    %33 = tpu.matmul %32, %9, %cst_19 {dimension_numbers = #tpu.dot_dimension_numbers<[1], [0], [0], [1], [0, 0, 1, 1], [], []>} : vector<8x128xbf16>, vector<128x128xbf16>, vector<8x128xf32> -> vector<8x128xf32>
    %34 = arith.addf %31, %33 : vector<8x128xf32>
    %35 = math.tanh %34 : vector<8x128xf32>
    %36 = arith.truncf %35 : vector<8x128xf32> to vector<8x128xbf16>
    %cst_20 = arith.constant dense<0.000000e+00> : vector<8x128xf32>
    %37 = tpu.matmul %36, %10, %cst_20 {dimension_numbers = #tpu.dot_dimension_numbers<[1], [0], [0], [1], [0, 0, 1, 1], [], []>} : vector<8x128xbf16>, vector<128x128xbf16>, vector<8x128xf32> -> vector<8x128xf32>
    %38 = arith.truncf %29 : vector<8x128xf32> to vector<8x128xbf16>
    %cst_21 = arith.constant dense<0.000000e+00> : vector<8x128xf32>
    %39 = tpu.matmul %38, %11, %cst_21 {dimension_numbers = #tpu.dot_dimension_numbers<[1], [0], [0], [1], [0, 0, 1, 1], [], []>} : vector<8x128xbf16>, vector<128x128xbf16>, vector<8x128xf32> -> vector<8x128xf32>
    %40 = arith.addf %37, %39 : vector<8x128xf32>
    %41 = arith.addf %40, %14 : vector<8x128xf32>
    %42 = math.tanh %41 : vector<8x128xf32>
    %43 = vector.extract_strided_slice %8 {offsets = [2, 0, 0], sizes = [1, 8, 128], strides = [1, 1, 1]} : vector<8x8x128xf32> to vector<1x8x128xf32>
    %44 = vector.shape_cast %43 : vector<1x8x128xf32> to vector<8x128xf32>
    %45 = arith.truncf %35 : vector<8x128xf32> to vector<8x128xbf16>
    %cst_22 = arith.constant dense<0.000000e+00> : vector<8x128xf32>
    %46 = tpu.matmul %45, %9, %cst_22 {dimension_numbers = #tpu.dot_dimension_numbers<[1], [0], [0], [1], [0, 0, 1, 1], [], []>} : vector<8x128xbf16>, vector<128x128xbf16>, vector<8x128xf32> -> vector<8x128xf32>
    %47 = arith.addf %44, %46 : vector<8x128xf32>
    %48 = math.tanh %47 : vector<8x128xf32>
    %49 = arith.truncf %48 : vector<8x128xf32> to vector<8x128xbf16>
    %cst_23 = arith.constant dense<0.000000e+00> : vector<8x128xf32>
    %50 = tpu.matmul %49, %10, %cst_23 {dimension_numbers = #tpu.dot_dimension_numbers<[1], [0], [0], [1], [0, 0, 1, 1], [], []>} : vector<8x128xbf16>, vector<128x128xbf16>, vector<8x128xf32> -> vector<8x128xf32>
    %51 = arith.truncf %42 : vector<8x128xf32> to vector<8x128xbf16>
    %cst_24 = arith.constant dense<0.000000e+00> : vector<8x128xf32>
    %52 = tpu.matmul %51, %11, %cst_24 {dimension_numbers = #tpu.dot_dimension_numbers<[1], [0], [0], [1], [0, 0, 1, 1], [], []>} : vector<8x128xbf16>, vector<128x128xbf16>, vector<8x128xf32> -> vector<8x128xf32>
    %53 = arith.addf %50, %52 : vector<8x128xf32>
    %54 = arith.addf %53, %14 : vector<8x128xf32>
    %55 = math.tanh %54 : vector<8x128xf32>
    %56 = vector.extract_strided_slice %8 {offsets = [3, 0, 0], sizes = [1, 8, 128], strides = [1, 1, 1]} : vector<8x8x128xf32> to vector<1x8x128xf32>
    %57 = vector.shape_cast %56 : vector<1x8x128xf32> to vector<8x128xf32>
    %58 = arith.truncf %48 : vector<8x128xf32> to vector<8x128xbf16>
    %cst_25 = arith.constant dense<0.000000e+00> : vector<8x128xf32>
    %59 = tpu.matmul %58, %9, %cst_25 {dimension_numbers = #tpu.dot_dimension_numbers<[1], [0], [0], [1], [0, 0, 1, 1], [], []>} : vector<8x128xbf16>, vector<128x128xbf16>, vector<8x128xf32> -> vector<8x128xf32>
    %60 = arith.addf %57, %59 : vector<8x128xf32>
    %61 = math.tanh %60 : vector<8x128xf32>
    %62 = arith.truncf %61 : vector<8x128xf32> to vector<8x128xbf16>
    %cst_26 = arith.constant dense<0.000000e+00> : vector<8x128xf32>
    %63 = tpu.matmul %62, %10, %cst_26 {dimension_numbers = #tpu.dot_dimension_numbers<[1], [0], [0], [1], [0, 0, 1, 1], [], []>} : vector<8x128xbf16>, vector<128x128xbf16>, vector<8x128xf32> -> vector<8x128xf32>
    %64 = arith.truncf %55 : vector<8x128xf32> to vector<8x128xbf16>
    %cst_27 = arith.constant dense<0.000000e+00> : vector<8x128xf32>
    %65 = tpu.matmul %64, %11, %cst_27 {dimension_numbers = #tpu.dot_dimension_numbers<[1], [0], [0], [1], [0, 0, 1, 1], [], []>} : vector<8x128xbf16>, vector<128x128xbf16>, vector<8x128xf32> -> vector<8x128xf32>
    %66 = arith.addf %63, %65 : vector<8x128xf32>
    %67 = arith.addf %66, %14 : vector<8x128xf32>
    %68 = math.tanh %67 : vector<8x128xf32>
    %69 = vector.extract_strided_slice %8 {offsets = [4, 0, 0], sizes = [1, 8, 128], strides = [1, 1, 1]} : vector<8x8x128xf32> to vector<1x8x128xf32>
    %70 = vector.shape_cast %69 : vector<1x8x128xf32> to vector<8x128xf32>
    %71 = arith.truncf %61 : vector<8x128xf32> to vector<8x128xbf16>
    %cst_28 = arith.constant dense<0.000000e+00> : vector<8x128xf32>
    %72 = tpu.matmul %71, %9, %cst_28 {dimension_numbers = #tpu.dot_dimension_numbers<[1], [0], [0], [1], [0, 0, 1, 1], [], []>} : vector<8x128xbf16>, vector<128x128xbf16>, vector<8x128xf32> -> vector<8x128xf32>
    %73 = arith.addf %70, %72 : vector<8x128xf32>
    %74 = math.tanh %73 : vector<8x128xf32>
    %75 = arith.truncf %74 : vector<8x128xf32> to vector<8x128xbf16>
    %cst_29 = arith.constant dense<0.000000e+00> : vector<8x128xf32>
    %76 = tpu.matmul %75, %10, %cst_29 {dimension_numbers = #tpu.dot_dimension_numbers<[1], [0], [0], [1], [0, 0, 1, 1], [], []>} : vector<8x128xbf16>, vector<128x128xbf16>, vector<8x128xf32> -> vector<8x128xf32>
    %77 = arith.truncf %68 : vector<8x128xf32> to vector<8x128xbf16>
    %cst_30 = arith.constant dense<0.000000e+00> : vector<8x128xf32>
    %78 = tpu.matmul %77, %11, %cst_30 {dimension_numbers = #tpu.dot_dimension_numbers<[1], [0], [0], [1], [0, 0, 1, 1], [], []>} : vector<8x128xbf16>, vector<128x128xbf16>, vector<8x128xf32> -> vector<8x128xf32>
    %79 = arith.addf %76, %78 : vector<8x128xf32>
    %80 = arith.addf %79, %14 : vector<8x128xf32>
    %81 = math.tanh %80 : vector<8x128xf32>
    %82 = vector.extract_strided_slice %8 {offsets = [5, 0, 0], sizes = [1, 8, 128], strides = [1, 1, 1]} : vector<8x8x128xf32> to vector<1x8x128xf32>
    %83 = vector.shape_cast %82 : vector<1x8x128xf32> to vector<8x128xf32>
    %84 = arith.truncf %74 : vector<8x128xf32> to vector<8x128xbf16>
    %cst_31 = arith.constant dense<0.000000e+00> : vector<8x128xf32>
    %85 = tpu.matmul %84, %9, %cst_31 {dimension_numbers = #tpu.dot_dimension_numbers<[1], [0], [0], [1], [0, 0, 1, 1], [], []>} : vector<8x128xbf16>, vector<128x128xbf16>, vector<8x128xf32> -> vector<8x128xf32>
    %86 = arith.addf %83, %85 : vector<8x128xf32>
    %87 = math.tanh %86 : vector<8x128xf32>
    %88 = arith.truncf %87 : vector<8x128xf32> to vector<8x128xbf16>
    %cst_32 = arith.constant dense<0.000000e+00> : vector<8x128xf32>
    %89 = tpu.matmul %88, %10, %cst_32 {dimension_numbers = #tpu.dot_dimension_numbers<[1], [0], [0], [1], [0, 0, 1, 1], [], []>} : vector<8x128xbf16>, vector<128x128xbf16>, vector<8x128xf32> -> vector<8x128xf32>
    %90 = arith.truncf %81 : vector<8x128xf32> to vector<8x128xbf16>
    %cst_33 = arith.constant dense<0.000000e+00> : vector<8x128xf32>
    %91 = tpu.matmul %90, %11, %cst_33 {dimension_numbers = #tpu.dot_dimension_numbers<[1], [0], [0], [1], [0, 0, 1, 1], [], []>} : vector<8x128xbf16>, vector<128x128xbf16>, vector<8x128xf32> -> vector<8x128xf32>
    %92 = arith.addf %89, %91 : vector<8x128xf32>
    %93 = arith.addf %92, %14 : vector<8x128xf32>
    %94 = math.tanh %93 : vector<8x128xf32>
    %95 = vector.extract_strided_slice %8 {offsets = [6, 0, 0], sizes = [1, 8, 128], strides = [1, 1, 1]} : vector<8x8x128xf32> to vector<1x8x128xf32>
    %96 = vector.shape_cast %95 : vector<1x8x128xf32> to vector<8x128xf32>
    %97 = arith.truncf %87 : vector<8x128xf32> to vector<8x128xbf16>
    %cst_34 = arith.constant dense<0.000000e+00> : vector<8x128xf32>
    %98 = tpu.matmul %97, %9, %cst_34 {dimension_numbers = #tpu.dot_dimension_numbers<[1], [0], [0], [1], [0, 0, 1, 1], [], []>} : vector<8x128xbf16>, vector<128x128xbf16>, vector<8x128xf32> -> vector<8x128xf32>
    %99 = arith.addf %96, %98 : vector<8x128xf32>
    %100 = math.tanh %99 : vector<8x128xf32>
    %101 = arith.truncf %100 : vector<8x128xf32> to vector<8x128xbf16>
    %cst_35 = arith.constant dense<0.000000e+00> : vector<8x128xf32>
    %102 = tpu.matmul %101, %10, %cst_35 {dimension_numbers = #tpu.dot_dimension_numbers<[1], [0], [0], [1], [0, 0, 1, 1], [], []>} : vector<8x128xbf16>, vector<128x128xbf16>, vector<8x128xf32> -> vector<8x128xf32>
    %103 = arith.truncf %94 : vector<8x128xf32> to vector<8x128xbf16>
    %cst_36 = arith.constant dense<0.000000e+00> : vector<8x128xf32>
    %104 = tpu.matmul %103, %11, %cst_36 {dimension_numbers = #tpu.dot_dimension_numbers<[1], [0], [0], [1], [0, 0, 1, 1], [], []>} : vector<8x128xbf16>, vector<128x128xbf16>, vector<8x128xf32> -> vector<8x128xf32>
    %105 = arith.addf %102, %104 : vector<8x128xf32>
    %106 = arith.addf %105, %14 : vector<8x128xf32>
    %107 = math.tanh %106 : vector<8x128xf32>
    %108 = vector.extract_strided_slice %8 {offsets = [7, 0, 0], sizes = [1, 8, 128], strides = [1, 1, 1]} : vector<8x8x128xf32> to vector<1x8x128xf32>
    %109 = vector.shape_cast %108 : vector<1x8x128xf32> to vector<8x128xf32>
    %110 = arith.truncf %100 : vector<8x128xf32> to vector<8x128xbf16>
    %cst_37 = arith.constant dense<0.000000e+00> : vector<8x128xf32>
    %111 = tpu.matmul %110, %9, %cst_37 {dimension_numbers = #tpu.dot_dimension_numbers<[1], [0], [0], [1], [0, 0, 1, 1], [], []>} : vector<8x128xbf16>, vector<128x128xbf16>, vector<8x128xf32> -> vector<8x128xf32>
    %112 = arith.addf %109, %111 : vector<8x128xf32>
    %113 = math.tanh %112 : vector<8x128xf32>
    %114 = arith.truncf %113 : vector<8x128xf32> to vector<8x128xbf16>
    %cst_38 = arith.constant dense<0.000000e+00> : vector<8x128xf32>
    %115 = tpu.matmul %114, %10, %cst_38 {dimension_numbers = #tpu.dot_dimension_numbers<[1], [0], [0], [1], [0, 0, 1, 1], [], []>} : vector<8x128xbf16>, vector<128x128xbf16>, vector<8x128xf32> -> vector<8x128xf32>
    %116 = arith.truncf %107 : vector<8x128xf32> to vector<8x128xbf16>
    %cst_39 = arith.constant dense<0.000000e+00> : vector<8x128xf32>
    %117 = tpu.matmul %116, %11, %cst_39 {dimension_numbers = #tpu.dot_dimension_numbers<[1], [0], [0], [1], [0, 0, 1, 1], [], []>} : vector<8x128xbf16>, vector<128x128xbf16>, vector<8x128xf32> -> vector<8x128xf32>
    %118 = arith.addf %115, %117 : vector<8x128xf32>
    %119 = arith.addf %118, %14 : vector<8x128xf32>
    %120 = math.tanh %119 : vector<8x128xf32>
    %121 = arith.truncf %120 : vector<8x128xf32> to vector<8x128xbf16>
    %c0_40 = arith.constant 0 : index
    %c0_41 = arith.constant 0 : index
    %122 = vector.load %arg7[%c0_40, %c0_41] : memref<128x128xbf16, #tpu.memory_space<vmem>>, vector<128x128xbf16>
    %cst_42 = arith.constant dense<0.000000e+00> : vector<8x128xf32>
    %123 = tpu.matmul %121, %122, %cst_42 {dimension_numbers = #tpu.dot_dimension_numbers<[1], [0], [0], [1], [0, 0, 1, 1], [], []>} : vector<8x128xbf16>, vector<128x128xbf16>, vector<8x128xf32> -> vector<8x128xf32>
    %c0_43 = arith.constant 0 : index
    %c0_44 = arith.constant 0 : index
    %124 = vector.load %arg8[%c0_43, %c0_44] : memref<1x128xf32, #tpu.memory_space<vmem>>, vector<1x128xf32>
    %125 = vector.broadcast %124 : vector<1x128xf32> to vector<8x128xf32>
    %126 = arith.addf %123, %125 : vector<8x128xf32>
    %127 = arith.negf %126 : vector<8x128xf32>
    %128 = math.exp %127 : vector<8x128xf32>
    %cst_45 = arith.constant 1.000000e+00 : f32
    %129 = vector.broadcast %cst_45 : f32 to vector<8x128xf32>
    %130 = arith.addf %129, %128 : vector<8x128xf32>
    %131 = arith.divf %129, %130 : vector<8x128xf32>
    %c0_46 = arith.constant 0 : index
    %c0_47 = arith.constant 0 : index
    %132 = vector.load %arg9[%c0_46, %c0_47] : memref<8x128xf32, #tpu.memory_space<vmem>>, vector<8x128xf32>
    tpu.vector_store %arg9[%c0_46, %c0_47], %131 {strides = array<i32>} : memref<8x128xf32, #tpu.memory_space<vmem>>, vector<8x128xf32>,
    return
  }
}

</mosaic_0001>

<llo_original>
// kernel: rnn_forward_pallas.1
$region0: #{rnn_forward_pallas.1}
  #allocation0 [shape = 'u32[]', space=smem, size = 0x4, offset = 0x4, fixed_abs, tag = 'smem constant byte address 0x4 - core index']
  #allocation1 [shape = 'u32[144,128]{1,0:T(1,128)}', space=vmem, size = 0x12000, scoped, tag = 'internal scratch']
  %s0 = inlined_call_operand.vmem [shape: bf16[8,8,4], index: 0, kind: input, shape index: {}]
  %s1 = inlined_call_operand.vmem [shape: bf16[4,128], index: 1, kind: input, shape index: {}]
  %s2 = inlined_call_operand.vmem [shape: bf16[128,128], index: 2, kind: input, shape index: {}]
  %s3 = inlined_call_operand.vmem [shape: f32[1,128], index: 3, kind: input, shape index: {}]
  %s4 = inlined_call_operand.vmem [shape: bf16[128,128], index: 4, kind: input, shape index: {}]
  %s5 = inlined_call_operand.vmem [shape: bf16[128,128], index: 5, kind: input, shape index: {}]
  %s6 = inlined_call_operand.vmem [shape: f32[1,128], index: 6, kind: input, shape index: {}]
  %s7 = inlined_call_operand.vmem [shape: bf16[128,128], index: 7, kind: input, shape index: {}]
  %s8 = inlined_call_operand.vmem [shape: f32[1,128], index: 8, kind: input, shape index: {}]
  %s9 = inlined_call_operand.vmem [shape: f32[8,128], index: 9, kind: output, shape index: {}]
  %s10 = sld [smem:[#allocation0]]
  $region46: #{rnn_forward_pallas.1} parent=0
    _
  %s12 = ssub.s32 1, %s10
  %s13 = scalar_select 0, %s12, %s10
  // Predicated region
  $region2: #{rnn_forward_pallas.1} parent=0 // pred_check
    _
  $region3: #{rnn_forward_pallas.1} parent=0 // pred_check_branch
    %15 = sbr.rel (0) target = $region5
  $region4: #{rnn_forward_pallas.1} parent=0 // pred_region
    _
  $region5: #{rnn_forward_pallas.1} parent=0 // pred_fallthru
    _
  // Predicated region
  $region6: #{rnn_forward_pallas.1} parent=0 // pred_check
    _
  $region7: #{rnn_forward_pallas.1} parent=0 // pred_check_branch
    %17 = sbr.rel (0) target = $region9
  $region8: #{rnn_forward_pallas.1} parent=0 // pred_region
    _
  $region9: #{rnn_forward_pallas.1} parent=0 // pred_fallthru
    _
  // Predicated region
  $region10: #{rnn_forward_pallas.1} parent=0 // pred_check
    _
  $region11: #{rnn_forward_pallas.1} parent=0 // pred_check_branch
    %19 = sbr.rel (0) target = $region13
  $region12: #{rnn_forward_pallas.1} parent=0 // pred_region
    _
  $region13: #{rnn_forward_pallas.1} parent=0 // pred_fallthru
    _
  // Predicated region
  $region14: #{rnn_forward_pallas.1} parent=0 // pred_check
    _
  $region15: #{rnn_forward_pallas.1} parent=0 // pred_check_branch
    %21 = sbr.rel (0) target = $region17
  $region16: #{rnn_forward_pallas.1} parent=0 // pred_region
    _
  $region17: #{rnn_forward_pallas.1} parent=0 // pred_fallthru
    _
  // Predicated region
  $region18: #{rnn_forward_pallas.1} parent=0 // pred_check
    _
  $region19: #{rnn_forward_pallas.1} parent=0 // pred_check_branch
    %23 = sbr.rel (0) target = $region21
  $region20: #{rnn_forward_pallas.1} parent=0 // pred_region
    _
  $region21: #{rnn_forward_pallas.1} parent=0 // pred_fallthru
    _
  // Predicated region
  $region22: #{rnn_forward_pallas.1} parent=0 // pred_check
    _
  $region23: #{rnn_forward_pallas.1} parent=0 // pred_check_branch
    %25 = sbr.rel (0) target = $region25
  $region24: #{rnn_forward_pallas.1} parent=0 // pred_region
    _
  $region25: #{rnn_forward_pallas.1} parent=0 // pred_fallthru
    _
  // Predicated region
  $region26: #{rnn_forward_pallas.1} parent=0 // pred_check
    _
  $region27: #{rnn_forward_pallas.1} parent=0 // pred_check_branch
    %27 = sbr.rel (0) target = $region29
  $region28: #{rnn_forward_pallas.1} parent=0 // pred_region
    _
  $region29: #{rnn_forward_pallas.1} parent=0 // pred_fallthru
    _
  // Predicated region
  $region30: #{rnn_forward_pallas.1} parent=0 // pred_check
    _
  $region31: #{rnn_forward_pallas.1} parent=0 // pred_check_branch
    %29 = sbr.rel (0) target = $region33
  $region32: #{rnn_forward_pallas.1} parent=0 // pred_region
    _
  $region33: #{rnn_forward_pallas.1} parent=0 // pred_fallthru
    _
  // Predicated region
  $region34: #{rnn_forward_pallas.1} parent=0 // pred_check
    _
  $region35: #{rnn_forward_pallas.1} parent=0 // pred_check_branch
    %31 = sbr.rel (0) target = $region37
  $region36: #{rnn_forward_pallas.1} parent=0 // pred_region
    _
  $region37: #{rnn_forward_pallas.1} parent=0 // pred_fallthru
    _
  %v33 = vld [vmem:[%s0] sm:$0xf]
  %v34 = vld [vmem:[%s0 + $0x4] sm:$0xf]
  %v35 = vld [vmem:[%s0 + $0x8] sm:$0xf]
  %v36 = vld [vmem:[%s0 + $0xc] sm:$0xf]
  %v37 = vld [vmem:[%s0 + $0x10] sm:$0xf]
  %v38 = vld [vmem:[%s0 + $0x14] sm:$0xf]
  %v39 = vld [vmem:[%s0 + $0x18] sm:$0xf]
  %v40 = vld [vmem:[%s0 + $0x1c] sm:$0xf]
  %v41 = vld [vmem:[%s1] sm:$0x3]
  %v50 = vunpack.c.l.b16 %v33
  %v51 = vunpack.c.l.b16 %v34
  %v52 = vunpack.c.l.b16 %v35
  %v53 = vunpack.c.l.b16 %v36
  %v54 = vunpack.c.l.b16 %v37
  %v55 = vunpack.c.l.b16 %v38
  %v56 = vunpack.c.l.b16 %v39
  %v57 = vunpack.c.l.b16 %v40
  %v58 = vpack.c.b16 %v51, %v50
  %v59 = vpack.c.b16 %v53, %v52
  %v60 = vpack.c.b16 %v55, %v54
  %v61 = vpack.c.b16 %v57, %v56
  %vm62 = vcmask 31744
  %v64 = vsel %vm62, %v58, 0
  %v67 = vsel %vm62, %v59, 0
  %v70 = vsel %vm62, %v60, 0
  %v73 = vsel %vm62, %v61, 0
  %vm75 = vcmask 1041408
  %v77 = vsel %vm75, %v41, 0
  %79 = vmatprep.subr.bf16.mxu0 0
  %80 = vmatpush1.bf16.msra.mxu0 %v77
  %81 = vmatprep.subr.bf16.mxu0 0
  %82 = vmatpush1.bf16.msra.mxu0 0
  %83 = vmatprep.subr.bf16.mxu0 0
  %84 = vmatpush1.bf16.msra.mxu0 0
  %85 = vmatprep.subr.bf16.mxu0 0
  %86 = vmatpush1.bf16.msra.mxu0 0
  %87 = vmatprep.subr.bf16.mxu0 0
  %88 = vmatpush1.bf16.msra.mxu0 0
  %89 = vmatprep.subr.bf16.mxu0 0
  %90 = vmatpush1.bf16.msra.mxu0 0
  %91 = vmatprep.subr.bf16.mxu0 0
  %92 = vmatpush1.bf16.msra.mxu0 0
  %93 = vmatprep.subr.bf16.mxu0 0
  %94 = vmatpush1.bf16.msra.mxu0 0
  %95 = vmatprep.subr.bf16.mxu0 0
  %96 = vmatpush1.bf16.msra.mxu0 0
  %97 = vmatprep.subr.bf16.mxu0 0
  %98 = vmatpush1.bf16.msra.mxu0 0
  %99 = vmatprep.subr.bf16.mxu0 0
  %100 = vmatpush1.bf16.msra.mxu0 0
  %101 = vmatprep.subr.bf16.mxu0 0
  %102 = vmatpush1.bf16.msra.mxu0 0
  %103 = vmatprep.subr.bf16.mxu0 0
  %104 = vmatpush1.bf16.msra.mxu0 0
  %105 = vmatprep.subr.bf16.mxu0 0
  %106 = vmatpush1.bf16.msra.mxu0 0
  %107 = vmatprep.subr.bf16.mxu0 0
  %108 = vmatpush1.bf16.msra.mxu0 0
  %109 = vmatprep.subr.bf16.mxu0 0
  %110 = vmatpush1.bf16.msra.mxu0 0
  %111 = vmatprep.mubr.bf16.mxu0 0
  %112 = vmatmul.mubr.bf16.gmra.mrb[0].mxu0 %v64
  %v113 = vpop.f32.mrb[0].mxu0
  %v114 = vadd.f32 0.0, %v113
  %v115 = vpop.f32.mrb[0].mxu0
  %v116 = vpop.f32.mrb[0].mxu0
  %v117 = vadd.f32 0.0, %v116
  %v118 = vpop.f32.mrb[0].mxu0
  %119 = vmatprep.mubr.bf16.mxu0 0
  %120 = vmatmul.mubr.bf16.gmra.mrb[0].mxu0 %v67
  %v121 = vpop.f32.mrb[0].mxu0
  %v122 = vadd.f32 0.0, %v121
  %v123 = vpop.f32.mrb[0].mxu0
  %v124 = vpop.f32.mrb[0].mxu0
  %v125 = vadd.f32 0.0, %v124
  %v126 = vpop.f32.mrb[0].mxu0
  %127 = vmatprep.mubr.bf16.mxu0 0
  %128 = vmatmul.mubr.bf16.gmra.mrb[0].mxu0 %v70
  %v129 = vpop.f32.mrb[0].mxu0
  %v130 = vadd.f32 0.0, %v129
  %v131 = vpop.f32.mrb[0].mxu0
  %v132 = vpop.f32.mrb[0].mxu0
  %v133 = vadd.f32 0.0, %v132
  %v134 = vpop.f32.mrb[0].mxu0
  %135 = vmatprep.mubr.bf16.mxu0 0
  %136 = vmatmul.mubr.bf16.gmra.mrb[0].mxu0 %v73
  %v137 = vpop.f32.mrb[0].mxu0
  %v138 = vadd.f32 0.0, %v137
  %v139 = vpop.f32.mrb[0].mxu0
  %v140 = vpop.f32.mrb[0].mxu0
  %v141 = vadd.f32 0.0, %v140
  %v142 = vpop.f32.mrb[0].mxu0
  %143 = vdwg.mxu0
  %v144 = vld [vmem:[%s3] sm:$0x1]
  %v146 = vlaneseq
  %v147 = vshrl.u32 %v146, 7
  %v148 = vsub.s32 0, %v147
  %v149 = vrot.slane %v144, %v148
  %v151 = vadd.f32 %v114, %v149
  %v152 = vadd.f32 %v117, %v149
  %v153 = vadd.f32 %v122, %v149
  %v154 = vadd.f32 %v125, %v149
  %v155 = vadd.f32 %v130, %v149
  %v156 = vadd.f32 %v133, %v149
  %v157 = vadd.f32 %v138, %v149
  %v158 = vadd.f32 %v141, %v149
  %v159 = vld [vmem:[%s2] sm:$0xf]
  %v160 = vld [vmem:[%s2 + $0x4] sm:$0xf]
  %v161 = vld [vmem:[%s2 + $0x8] sm:$0xf]
  %v162 = vld [vmem:[%s2 + $0xc] sm:$0xf]
  %v163 = vld [vmem:[%s2 + $0x10] sm:$0xf]
  %v164 = vld [vmem:[%s2 + $0x14] sm:$0xf]
  %v165 = vld [vmem:[%s2 + $0x18] sm:$0xf]
  %v166 = vld [vmem:[%s2 + $0x1c] sm:$0xf]
  %v167 = vld [vmem:[%s2 + $0x20] sm:$0xf]
  %v168 = vld [vmem:[%s2 + $0x24] sm:$0xf]
  %v169 = vld [vmem:[%s2 + $0x28] sm:$0xf]
  %v170 = vld [vmem:[%s2 + $0x2c] sm:$0xf]
  %v171 = vld [vmem:[%s2 + $0x30] sm:$0xf]
  %v172 = vld [vmem:[%s2 + $0x34] sm:$0xf]
  %v173 = vld [vmem:[%s2 + $0x38] sm:$0xf]
  %v174 = vld [vmem:[%s2 + $0x3c] sm:$0xf]
  %v175 = vld [vmem:[%s4] sm:$0xf]
  %v176 = vld [vmem:[%s4 + $0x4] sm:$0xf]
  %v177 = vld [vmem:[%s4 + $0x8] sm:$0xf]
  %v178 = vld [vmem:[%s4 + $0xc] sm:$0xf]
  %v179 = vld [vmem:[%s4 + $0x10] sm:$0xf]
  %v180 = vld [vmem:[%s4 + $0x14] sm:$0xf]
  %v181 = vld [vmem:[%s4 + $0x18] sm:$0xf]
  %v182 = vld [vmem:[%s4 + $0x1c] sm:$0xf]
  %v183 = vld [vmem:[%s4 + $0x20] sm:$0xf]
  %v184 = vld [vmem:[%s4 + $0x24] sm:$0xf]
  %v185 = vld [vmem:[%s4 + $0x28] sm:$0xf]
  %v186 = vld [vmem:[%s4 + $0x2c] sm:$0xf]
  %v187 = vld [vmem:[%s4 + $0x30] sm:$0xf]
  %v188 = vld [vmem:[%s4 + $0x34] sm:$0xf]
  %v189 = vld [vmem:[%s4 + $0x38] sm:$0xf]
  %v190 = vld [vmem:[%s4 + $0x3c] sm:$0xf]
  %v191 = vld [vmem:[%s5] sm:$0xf]
  %v192 = vld [vmem:[%s5 + $0x4] sm:$0xf]
  %v193 = vld [vmem:[%s5 + $0x8] sm:$0xf]
  %v194 = vld [vmem:[%s5 + $0xc] sm:$0xf]
  %v195 = vld [vmem:[%s5 + $0x10] sm:$0xf]
  %v196 = vld [vmem:[%s5 + $0x14] sm:$0xf]
  %v197 = vld [vmem:[%s5 + $0x18] sm:$0xf]
  %v198 = vld [vmem:[%s5 + $0x1c] sm:$0xf]
  %v199 = vld [vmem:[%s5 + $0x20] sm:$0xf]
  %v200 = vld [vmem:[%s5 + $0x24] sm:$0xf]
  %v201 = vld [vmem:[%s5 + $0x28] sm:$0xf]
  %v202 = vld [vmem:[%s5 + $0x2c] sm:$0xf]
  %v203 = vld [vmem:[%s5 + $0x30] sm:$0xf]
  %v204 = vld [vmem:[%s5 + $0x34] sm:$0xf]
  %v205 = vld [vmem:[%s5 + $0x38] sm:$0xf]
  %v206 = vld [vmem:[%s5 + $0x3c] sm:$0xf]
  %v207 = vld [vmem:[%s6] sm:$0x1]
  %v209 = vlaneseq
  %v210 = vshrl.u32 %v209, 7
  %v211 = vsub.s32 0, %v210
  %v212 = vrot.slane %v207, %v211
  %v230 = vunpack.c.l.b16 %v159
  %v231 = vunpack.c.l.b16 %v160
  %v232 = vunpack.c.l.b16 %v161
  %v233 = vunpack.c.l.b16 %v162
  %v234 = vunpack.c.l.b16 %v163
  %v235 = vunpack.c.l.b16 %v164
  %v236 = vunpack.c.l.b16 %v165
  %v237 = vunpack.c.l.b16 %v166
  %v238 = vunpack.c.l.b16 %v167
  %v239 = vunpack.c.l.b16 %v168
  %v240 = vunpack.c.l.b16 %v169
  %v241 = vunpack.c.l.b16 %v170
  %v242 = vunpack.c.l.b16 %v171
  %v243 = vunpack.c.l.b16 %v172
  %v244 = vunpack.c.l.b16 %v173
  %v245 = vunpack.c.l.b16 %v174
  %v246 = vpack.c.b16 %v231, %v230
  %v247 = vpack.c.b16 %v233, %v232
  %v248 = vpack.c.b16 %v235, %v234
  %v249 = vpack.c.b16 %v237, %v236
  %v250 = vpack.c.b16 %v239, %v238
  %v251 = vpack.c.b16 %v241, %v240
  %v252 = vpack.c.b16 %v243, %v242
  %v253 = vpack.c.b16 %v245, %v244
  %262 = vmatprep.subr.bf16.mxu0 0
  %263 = vmatpush1.bf16.msra.mxu0 %v246
  %264 = vmatprep.subr.bf16.mxu0 0
  %265 = vmatpush1.bf16.msra.mxu0 %v247
  %266 = vmatprep.subr.bf16.mxu0 0
  %267 = vmatpush1.bf16.msra.mxu0 %v248
  %268 = vmatprep.subr.bf16.mxu0 0
  %269 = vmatpush1.bf16.msra.mxu0 %v249
  %270 = vmatprep.subr.bf16.mxu0 0
  %271 = vmatpush1.bf16.msra.mxu0 %v250
  %272 = vmatprep.subr.bf16.mxu0 0
  %273 = vmatpush1.bf16.msra.mxu0 %v251
  %274 = vmatprep.subr.bf16.mxu0 0
  %275 = vmatpush1.bf16.msra.mxu0 %v252
  %276 = vmatprep.subr.bf16.mxu0 0
  %277 = vmatpush1.bf16.msra.mxu0 %v253
  %278 = vmatprep.subr.bf16.mxu0 0
  %279 = vmatpush1.bf16.msra.mxu0 0
  %280 = vmatprep.subr.bf16.mxu0 0
  %281 = vmatpush1.bf16.msra.mxu0 0
  %282 = vmatprep.subr.bf16.mxu0 0
  %283 = vmatpush1.bf16.msra.mxu0 0
  %284 = vmatprep.subr.bf16.mxu0 0
  %285 = vmatpush1.bf16.msra.mxu0 0
  %286 = vmatprep.subr.bf16.mxu0 0
  %287 = vmatpush1.bf16.msra.mxu0 0
  %288 = vmatprep.subr.bf16.mxu0 0
  %289 = vmatpush1.bf16.msra.mxu0 0
  %290 = vmatprep.subr.bf16.mxu0 0
  %291 = vmatpush1.bf16.msra.mxu0 0
  %292 = vmatprep.subr.bf16.mxu0 0
  %293 = vmatpush1.bf16.msra.mxu0 0
  %294 = vmatprep.mubr.bf16.mxu0 0
  %295 = vmatmul.mubr.bf16.gmra.mrb[0].mxu0 0
  %v296 = vpop.f32.mrb[0].mxu0
  %v297 = vadd.f32 0.0, %v296
  %v298 = vpop.f32.mrb[0].mxu0
  %v299 = vpop.f32.mrb[0].mxu0
  %v300 = vpop.f32.mrb[0].mxu0
  %301 = vdwg.mxu0
  %v302 = vadd.f32 %v151, %v297
  %v303 = vtanh.pop %v302
  %v304 = vpack.c.bf16 %v303, %v303
  %v321 = vunpack.c.l.b16 %v191
  %v322 = vunpack.c.l.b16 %v192
  %v323 = vunpack.c.l.b16 %v193
  %v324 = vunpack.c.l.b16 %v194
  %v325 = vunpack.c.l.b16 %v195
  %v326 = vunpack.c.l.b16 %v196
  %v327 = vunpack.c.l.b16 %v197
  %v328 = vunpack.c.l.b16 %v198
  %v329 = vunpack.c.l.b16 %v199
  %v330 = vunpack.c.l.b16 %v200
  %v331 = vunpack.c.l.b16 %v201
  %v332 = vunpack.c.l.b16 %v202
  %v333 = vunpack.c.l.b16 %v203
  %v334 = vunpack.c.l.b16 %v204
  %v335 = vunpack.c.l.b16 %v205
  %v336 = vunpack.c.l.b16 %v206
  %v337 = vpack.c.b16 %v322, %v321
  %v338 = vpack.c.b16 %v324, %v323
  %v339 = vpack.c.b16 %v326, %v325
  %v340 = vpack.c.b16 %v328, %v327
  %v341 = vpack.c.b16 %v330, %v329
  %v342 = vpack.c.b16 %v332, %v331
  %v343 = vpack.c.b16 %v334, %v333
  %v344 = vpack.c.b16 %v336, %v335
  %353 = vmatprep.subr.bf16.mxu0 0
  %354 = vmatpush1.bf16.msra.mxu0 %v337
  %355 = vmatprep.subr.bf16.mxu0 0
  %356 = vmatpush1.bf16.msra.mxu0 %v338
  %357 = vmatprep.subr.bf16.mxu0 0
  %358 = vmatpush1.bf16.msra.mxu0 %v339
  %359 = vmatprep.subr.bf16.mxu0 0
  %360 = vmatpush1.bf16.msra.mxu0 %v340
  %361 = vmatprep.subr.bf16.mxu0 0
  %362 = vmatpush1.bf16.msra.mxu0 %v341
  %363 = vmatprep.subr.bf16.mxu0 0
  %364 = vmatpush1.bf16.msra.mxu0 %v342
  %365 = vmatprep.subr.bf16.mxu0 0
  %366 = vmatpush1.bf16.msra.mxu0 %v343
  %367 = vmatprep.subr.bf16.mxu0 0
  %368 = vmatpush1.bf16.msra.mxu0 %v344
  %369 = vmatprep.subr.bf16.mxu0 0
  %370 = vmatpush1.bf16.msra.mxu0 0
  %371 = vmatprep.subr.bf16.mxu0 0
  %372 = vmatpush1.bf16.msra.mxu0 0
  %373 = vmatprep.subr.bf16.mxu0 0
  %374 = vmatpush1.bf16.msra.mxu0 0
  %375 = vmatprep.subr.bf16.mxu0 0
  %376 = vmatpush1.bf16.msra.mxu0 0
  %377 = vmatprep.subr.bf16.mxu0 0
  %378 = vmatpush1.bf16.msra.mxu0 0
  %379 = vmatprep.subr.bf16.mxu0 0
  %380 = vmatpush1.bf16.msra.mxu0 0
  %381 = vmatprep.subr.bf16.mxu0 0
  %382 = vmatpush1.bf16.msra.mxu0 0
  %383 = vmatprep.subr.bf16.mxu0 0
  %384 = vmatpush1.bf16.msra.mxu0 0
  %385 = vmatprep.mubr.bf16.mxu0 0
  %386 = vmatmul.mubr.bf16.gmra.mrb[0].mxu0 0
  %v387 = vpop.f32.mrb[0].mxu0
  %v388 = vadd.f32 0.0, %v387
  %v389 = vpop.f32.mrb[0].mxu0
  %v390 = vpop.f32.mrb[0].mxu0
  %v391 = vpop.f32.mrb[0].mxu0
  %392 = vdwg.mxu0
  %v409 = vunpack.c.l.b16 %v175
  %v410 = vunpack.c.l.b16 %v176
  %v411 = vunpack.c.l.b16 %v177
  %v412 = vunpack.c.l.b16 %v178
  %v413 = vunpack.c.l.b16 %v179
  %v414 = vunpack.c.l.b16 %v180
  %v415 = vunpack.c.l.b16 %v181
  %v416 = vunpack.c.l.b16 %v182
  %v417 = vunpack.c.l.b16 %v183
  %v418 = vunpack.c.l.b16 %v184
  %v419 = vunpack.c.l.b16 %v185
  %v420 = vunpack.c.l.b16 %v186
  %v421 = vunpack.c.l.b16 %v187
  %v422 = vunpack.c.l.b16 %v188
  %v423 = vunpack.c.l.b16 %v189
  %v424 = vunpack.c.l.b16 %v190
  %v425 = vpack.c.b16 %v410, %v409
  %v426 = vpack.c.b16 %v412, %v411
  %v427 = vpack.c.b16 %v414, %v413
  %v428 = vpack.c.b16 %v416, %v415
  %v429 = vpack.c.b16 %v418, %v417
  %v430 = vpack.c.b16 %v420, %v419
  %v431 = vpack.c.b16 %v422, %v421
  %v432 = vpack.c.b16 %v424, %v423
  %441 = vmatprep.subr.bf16.mxu0 0
  %442 = vmatpush1.bf16.msra.mxu0 %v425
  %443 = vmatprep.subr.bf16.mxu0 0
  %444 = vmatpush1.bf16.msra.mxu0 %v426
  %445 = vmatprep.subr.bf16.mxu0 0
  %446 = vmatpush1.bf16.msra.mxu0 %v427
  %447 = vmatprep.subr.bf16.mxu0 0
  %448 = vmatpush1.bf16.msra.mxu0 %v428
  %449 = vmatprep.subr.bf16.mxu0 0
  %450 = vmatpush1.bf16.msra.mxu0 %v429
  %451 = vmatprep.subr.bf16.mxu0 0
  %452 = vmatpush1.bf16.msra.mxu0 %v430
  %453 = vmatprep.subr.bf16.mxu0 0
  %454 = vmatpush1.bf16.msra.mxu0 %v431
  %455 = vmatprep.subr.bf16.mxu0 0
  %456 = vmatpush1.bf16.msra.mxu0 %v432
  %457 = vmatprep.subr.bf16.mxu0 0
  %458 = vmatpush1.bf16.msra.mxu0 0
  %459 = vmatprep.subr.bf16.mxu0 0
  %460 = vmatpush1.bf16.msra.mxu0 0
  %461 = vmatprep.subr.bf16.mxu0 0
  %462 = vmatpush1.bf16.msra.mxu0 0
  %463 = vmatprep.subr.bf16.mxu0 0
  %464 = vmatpush1.bf16.msra.mxu0 0
  %465 = vmatprep.subr.bf16.mxu0 0
  %466 = vmatpush1.bf16.msra.mxu0 0
  %467 = vmatprep.subr.bf16.mxu0 0
  %468 = vmatpush1.bf16.msra.mxu0 0
  %469 = vmatprep.subr.bf16.mxu0 0
  %470 = vmatpush1.bf16.msra.mxu0 0
  %471 = vmatprep.subr.bf16.mxu0 0
  %472 = vmatpush1.bf16.msra.mxu0 0
  %473 = vmatprep.mubr.bf16.mxu0 0
  %474 = vmatmul.mubr.bf16.gmra.mrb[0].mxu0 %v304
  %v475 = vpop.f32.mrb[0].mxu0
  %v476 = vadd.f32 %v388, %v475
  %v477 = vpop.f32.mrb[0].mxu0
  %v478 = vpop.f32.mrb[0].mxu0
  %v479 = vpop.f32.mrb[0].mxu0
  %480 = vdwg.mxu0
  %v481 = vadd.f32 %v476, %v212
  %v482 = vtanh.pop %v481
  %483 = vmatprep.subr.bf16.mxu0 0
  %484 = vmatpush1.bf16.msra.mxu0 %v246
  %485 = vmatprep.subr.bf16.mxu0 0
  %486 = vmatpush1.bf16.msra.mxu0 %v247
  %487 = vmatprep.subr.bf16.mxu0 0
  %488 = vmatpush1.bf16.msra.mxu0 %v248
  %489 = vmatprep.subr.bf16.mxu0 0
  %490 = vmatpush1.bf16.msra.mxu0 %v249
  %491 = vmatprep.subr.bf16.mxu0 0
  %492 = vmatpush1.bf16.msra.mxu0 %v250
  %493 = vmatprep.subr.bf16.mxu0 0
  %494 = vmatpush1.bf16.msra.mxu0 %v251
  %495 = vmatprep.subr.bf16.mxu0 0
  %496 = vmatpush1.bf16.msra.mxu0 %v252
  %497 = vmatprep.subr.bf16.mxu0 0
  %498 = vmatpush1.bf16.msra.mxu0 %v253
  %499 = vmatprep.subr.bf16.mxu0 0
  %500 = vmatpush1.bf16.msra.mxu0 0
  %501 = vmatprep.subr.bf16.mxu0 0
  %502 = vmatpush1.bf16.msra.mxu0 0
  %503 = vmatprep.subr.bf16.mxu0 0
  %504 = vmatpush1.bf16.msra.mxu0 0
  %505 = vmatprep.subr.bf16.mxu0 0
  %506 = vmatpush1.bf16.msra.mxu0 0
  %507 = vmatprep.subr.bf16.mxu0 0
  %508 = vmatpush1.bf16.msra.mxu0 0
  %509 = vmatprep.subr.bf16.mxu0 0
  %510 = vmatpush1.bf16.msra.mxu0 0
  %511 = vmatprep.subr.bf16.mxu0 0
  %512 = vmatpush1.bf16.msra.mxu0 0
  %513 = vmatprep.subr.bf16.mxu0 0
  %514 = vmatpush1.bf16.msra.mxu0 0
  %515 = vmatprep.mubr.bf16.mxu0 0
  %516 = vmatmul.mubr.bf16.gmra.mrb[0].mxu0 %v304
  %v517 = vpop.f32.mrb[0].mxu0
  %v518 = vadd.f32 0.0, %v517
  %v519 = vpop.f32.mrb[0].mxu0
  %v520 = vpop.f32.mrb[0].mxu0
  %v521 = vpop.f32.mrb[0].mxu0
  %522 = vdwg.mxu0
  %v523 = vadd.f32 %v152, %v518
  %v524 = vtanh.pop %v523
  %v525 = vpack.c.bf16 %v524, %v524
  %v526 = vpack.c.bf16 %v482, %v482
  %527 = vmatprep.subr.bf16.mxu0 0
  %528 = vmatpush1.bf16.msra.mxu0 %v337
  %529 = vmatprep.subr.bf16.mxu0 0
  %530 = vmatpush1.bf16.msra.mxu0 %v338
  %531 = vmatprep.subr.bf16.mxu0 0
  %532 = vmatpush1.bf16.msra.mxu0 %v339
  %533 = vmatprep.subr.bf16.mxu0 0
  %534 = vmatpush1.bf16.msra.mxu0 %v340
  %535 = vmatprep.subr.bf16.mxu0 0
  %536 = vmatpush1.bf16.msra.mxu0 %v341
  %537 = vmatprep.subr.bf16.mxu0 0
  %538 = vmatpush1.bf16.msra.mxu0 %v342
  %539 = vmatprep.subr.bf16.mxu0 0
  %540 = vmatpush1.bf16.msra.mxu0 %v343
  %541 = vmatprep.subr.bf16.mxu0 0
  %542 = vmatpush1.bf16.msra.mxu0 %v344
  %543 = vmatprep.subr.bf16.mxu0 0
  %544 = vmatpush1.bf16.msra.mxu0 0
  %545 = vmatprep.subr.bf16.mxu0 0
  %546 = vmatpush1.bf16.msra.mxu0 0
  %547 = vmatprep.subr.bf16.mxu0 0
  %548 = vmatpush1.bf16.msra.mxu0 0
  %549 = vmatprep.subr.bf16.mxu0 0
  %550 = vmatpush1.bf16.msra.mxu0 0
  %551 = vmatprep.subr.bf16.mxu0 0
  %552 = vmatpush1.bf16.msra.mxu0 0
  %553 = vmatprep.subr.bf16.mxu0 0
  %554 = vmatpush1.bf16.msra.mxu0 0
  %555 = vmatprep.subr.bf16.mxu0 0
  %556 = vmatpush1.bf16.msra.mxu0 0
  %557 = vmatprep.subr.bf16.mxu0 0
  %558 = vmatpush1.bf16.msra.mxu0 0
  %559 = vmatprep.mubr.bf16.mxu0 0
  %560 = vmatmul.mubr.bf16.gmra.mrb[0].mxu0 %v526
  %v561 = vpop.f32.mrb[0].mxu0
  %v562 = vadd.f32 0.0, %v561
  %v563 = vpop.f32.mrb[0].mxu0
  %v564 = vpop.f32.mrb[0].mxu0
  %v565 = vpop.f32.mrb[0].mxu0
  %566 = vdwg.mxu0
  %567 = vmatprep.subr.bf16.mxu0 0
  %568 = vmatpush1.bf16.msra.mxu0 %v425
  %569 = vmatprep.subr.bf16.mxu0 0
  %570 = vmatpush1.bf16.msra.mxu0 %v426
  %571 = vmatprep.subr.bf16.mxu0 0
  %572 = vmatpush1.bf16.msra.mxu0 %v427
  %573 = vmatprep.subr.bf16.mxu0 0
  %574 = vmatpush1.bf16.msra.mxu0 %v428
  %575 = vmatprep.subr.bf16.mxu0 0
  %576 = vmatpush1.bf16.msra.mxu0 %v429
  %577 = vmatprep.subr.bf16.mxu0 0
  %578 = vmatpush1.bf16.msra.mxu0 %v430
  %579 = vmatprep.subr.bf16.mxu0 0
  %580 = vmatpush1.bf16.msra.mxu0 %v431
  %581 = vmatprep.subr.bf16.mxu0 0
  %582 = vmatpush1.bf16.msra.mxu0 %v432
  %583 = vmatprep.subr.bf16.mxu0 0
  %584 = vmatpush1.bf16.msra.mxu0 0
  %585 = vmatprep.subr.bf16.mxu0 0
  %586 = vmatpush1.bf16.msra.mxu0 0
  %587 = vmatprep.subr.bf16.mxu0 0
  %588 = vmatpush1.bf16.msra.mxu0 0
  %589 = vmatprep.subr.bf16.mxu0 0
  %590 = vmatpush1.bf16.msra.mxu0 0
  %591 = vmatprep.subr.bf16.mxu0 0
  %592 = vmatpush1.bf16.msra.mxu0 0
  %593 = vmatprep.subr.bf16.mxu0 0
  %594 = vmatpush1.bf16.msra.mxu0 0
  %595 = vmatprep.subr.bf16.mxu0 0
  %596 = vmatpush1.bf16.msra.mxu0 0
  %597 = vmatprep.subr.bf16.mxu0 0
  %598 = vmatpush1.bf16.msra.mxu0 0
  %599 = vmatprep.mubr.bf16.mxu0 0
  %600 = vmatmul.mubr.bf16.gmra.mrb[0].mxu0 %v525
  %v601 = vpop.f32.mrb[0].mxu0
  %v602 = vadd.f32 %v562, %v601
  %v603 = vpop.f32.mrb[0].mxu0
  %v604 = vpop.f32.mrb[0].mxu0
  %v605 = vpop.f32.mrb[0].mxu0
  %606 = vdwg.mxu0
  %v607 = vadd.f32 %v602, %v212
  %v608 = vtanh.pop %v607
  %609 = vmatprep.subr.bf16.mxu0 0
  %610 = vmatpush1.bf16.msra.mxu0 %v246
  %611 = vmatprep.subr.bf16.mxu0 0
  %612 = vmatpush1.bf16.msra.mxu0 %v247
  %613 = vmatprep.subr.bf16.mxu0 0
  %614 = vmatpush1.bf16.msra.mxu0 %v248
  %615 = vmatprep.subr.bf16.mxu0 0
  %616 = vmatpush1.bf16.msra.mxu0 %v249
  %617 = vmatprep.subr.bf16.mxu0 0
  %618 = vmatpush1.bf16.msra.mxu0 %v250
  %619 = vmatprep.subr.bf16.mxu0 0
  %620 = vmatpush1.bf16.msra.mxu0 %v251
  %621 = vmatprep.subr.bf16.mxu0 0
  %622 = vmatpush1.bf16.msra.mxu0 %v252
  %623 = vmatprep.subr.bf16.mxu0 0
  %624 = vmatpush1.bf16.msra.mxu0 %v253
  %625 = vmatprep.subr.bf16.mxu0 0
  %626 = vmatpush1.bf16.msra.mxu0 0
  %627 = vmatprep.subr.bf16.mxu0 0
  %628 = vmatpush1.bf16.msra.mxu0 0
  %629 = vmatprep.subr.bf16.mxu0 0
  %630 = vmatpush1.bf16.msra.mxu0 0
  %631 = vmatprep.subr.bf16.mxu0 0
  %632 = vmatpush1.bf16.msra.mxu0 0
  %633 = vmatprep.subr.bf16.mxu0 0
  %634 = vmatpush1.bf16.msra.mxu0 0
  %635 = vmatprep.subr.bf16.mxu0 0
  %636 = vmatpush1.bf16.msra.mxu0 0
  %637 = vmatprep.subr.bf16.mxu0 0
  %638 = vmatpush1.bf16.msra.mxu0 0
  %639 = vmatprep.subr.bf16.mxu0 0
  %640 = vmatpush1.bf16.msra.mxu0 0
  %641 = vmatprep.mubr.bf16.mxu0 0
  %642 = vmatmul.mubr.bf16.gmra.mrb[0].mxu0 %v525
  %v643 = vpop.f32.mrb[0].mxu0
  %v644 = vadd.f32 0.0, %v643
  %v645 = vpop.f32.mrb[0].mxu0
  %v646 = vpop.f32.mrb[0].mxu0
  %v647 = vpop.f32.mrb[0].mxu0
  %648 = vdwg.mxu0
  %v649 = vadd.f32 %v153, %v644
  %v650 = vtanh.pop %v649
  %v651 = vpack.c.bf16 %v650, %v650
  %v652 = vpack.c.bf16 %v608, %v608
  %653 = vmatprep.subr.bf16.mxu0 0
  %654 = vmatpush1.bf16.msra.mxu0 %v337
  %655 = vmatprep.subr.bf16.mxu0 0
  %656 = vmatpush1.bf16.msra.mxu0 %v338
  %657 = vmatprep.subr.bf16.mxu0 0
  %658 = vmatpush1.bf16.msra.mxu0 %v339
  %659 = vmatprep.subr.bf16.mxu0 0
  %660 = vmatpush1.bf16.msra.mxu0 %v340
  %661 = vmatprep.subr.bf16.mxu0 0
  %662 = vmatpush1.bf16.msra.mxu0 %v341
  %663 = vmatprep.subr.bf16.mxu0 0
  %664 = vmatpush1.bf16.msra.mxu0 %v342
  %665 = vmatprep.subr.bf16.mxu0 0
  %666 = vmatpush1.bf16.msra.mxu0 %v343
  %667 = vmatprep.subr.bf16.mxu0 0
  %668 = vmatpush1.bf16.msra.mxu0 %v344
  %669 = vmatprep.subr.bf16.mxu0 0
  %670 = vmatpush1.bf16.msra.mxu0 0
  %671 = vmatprep.subr.bf16.mxu0 0
  %672 = vmatpush1.bf16.msra.mxu0 0
  %673 = vmatprep.subr.bf16.mxu0 0
  %674 = vmatpush1.bf16.msra.mxu0 0
  %675 = vmatprep.subr.bf16.mxu0 0
  %676 = vmatpush1.bf16.msra.mxu0 0
  %677 = vmatprep.subr.bf16.mxu0 0
  %678 = vmatpush1.bf16.msra.mxu0 0
  %679 = vmatprep.subr.bf16.mxu0 0
  %680 = vmatpush1.bf16.msra.mxu0 0
  %681 = vmatprep.subr.bf16.mxu0 0
  %682 = vmatpush1.bf16.msra.mxu0 0
  %683 = vmatprep.subr.bf16.mxu0 0
  %684 = vmatpush1.bf16.msra.mxu0 0
  %685 = vmatprep.mubr.bf16.mxu0 0
  %686 = vmatmul.mubr.bf16.gmra.mrb[0].mxu0 %v652
  %v687 = vpop.f32.mrb[0].mxu0
  %v688 = vadd.f32 0.0, %v687
  %v689 = vpop.f32.mrb[0].mxu0
  %v690 = vpop.f32.mrb[0].mxu0
  %v691 = vpop.f32.mrb[0].mxu0
  %692 = vdwg.mxu0
  %693 = vmatprep.subr.bf16.mxu0 0
  %694 = vmatpush1.bf16.msra.mxu0 %v425
  %695 = vmatprep.subr.bf16.mxu0 0
  %696 = vmatpush1.bf16.msra.mxu0 %v426
  %697 = vmatprep.subr.bf16.mxu0 0
  %698 = vmatpush1.bf16.msra.mxu0 %v427
  %699 = vmatprep.subr.bf16.mxu0 0
  %700 = vmatpush1.bf16.msra.mxu0 %v428
  %701 = vmatprep.subr.bf16.mxu0 0
  %702 = vmatpush1.bf16.msra.mxu0 %v429
  %703 = vmatprep.subr.bf16.mxu0 0
  %704 = vmatpush1.bf16.msra.mxu0 %v430
  %705 = vmatprep.subr.bf16.mxu0 0
  %706 = vmatpush1.bf16.msra.mxu0 %v431
  %707 = vmatprep.subr.bf16.mxu0 0
  %708 = vmatpush1.bf16.msra.mxu0 %v432
  %709 = vmatprep.subr.bf16.mxu0 0
  %710 = vmatpush1.bf16.msra.mxu0 0
  %711 = vmatprep.subr.bf16.mxu0 0
  %712 = vmatpush1.bf16.msra.mxu0 0
  %713 = vmatprep.subr.bf16.mxu0 0
  %714 = vmatpush1.bf16.msra.mxu0 0
  %715 = vmatprep.subr.bf16.mxu0 0
  %716 = vmatpush1.bf16.msra.mxu0 0
  %717 = vmatprep.subr.bf16.mxu0 0
  %718 = vmatpush1.bf16.msra.mxu0 0
  %719 = vmatprep.subr.bf16.mxu0 0
  %720 = vmatpush1.bf16.msra.mxu0 0
  %721 = vmatprep.subr.bf16.mxu0 0
  %722 = vmatpush1.bf16.msra.mxu0 0
  %723 = vmatprep.subr.bf16.mxu0 0
  %724 = vmatpush1.bf16.msra.mxu0 0
  %725 = vmatprep.mubr.bf16.mxu0 0
  %726 = vmatmul.mubr.bf16.gmra.mrb[0].mxu0 %v651
  %v727 = vpop.f32.mrb[0].mxu0
  %v728 = vadd.f32 %v688, %v727
  %v729 = vpop.f32.mrb[0].mxu0
  %v730 = vpop.f32.mrb[0].mxu0
  %v731 = vpop.f32.mrb[0].mxu0
  %732 = vdwg.mxu0
  %v733 = vadd.f32 %v728, %v212
  %v734 = vtanh.pop %v733
  %735 = vmatprep.subr.bf16.mxu0 0
  %736 = vmatpush1.bf16.msra.mxu0 %v246
  %737 = vmatprep.subr.bf16.mxu0 0
  %738 = vmatpush1.bf16.msra.mxu0 %v247
  %739 = vmatprep.subr.bf16.mxu0 0
  %740 = vmatpush1.bf16.msra.mxu0 %v248
  %741 = vmatprep.subr.bf16.mxu0 0
  %742 = vmatpush1.bf16.msra.mxu0 %v249
  %743 = vmatprep.subr.bf16.mxu0 0
  %744 = vmatpush1.bf16.msra.mxu0 %v250
  %745 = vmatprep.subr.bf16.mxu0 0
  %746 = vmatpush1.bf16.msra.mxu0 %v251
  %747 = vmatprep.subr.bf16.mxu0 0
  %748 = vmatpush1.bf16.msra.mxu0 %v252
  %749 = vmatprep.subr.bf16.mxu0 0
  %750 = vmatpush1.bf16.msra.mxu0 %v253
  %751 = vmatprep.subr.bf16.mxu0 0
  %752 = vmatpush1.bf16.msra.mxu0 0
  %753 = vmatprep.subr.bf16.mxu0 0
  %754 = vmatpush1.bf16.msra.mxu0 0
  %755 = vmatprep.subr.bf16.mxu0 0
  %756 = vmatpush1.bf16.msra.mxu0 0
  %757 = vmatprep.subr.bf16.mxu0 0
  %758 = vmatpush1.bf16.msra.mxu0 0
  %759 = vmatprep.subr.bf16.mxu0 0
  %760 = vmatpush1.bf16.msra.mxu0 0
  %761 = vmatprep.subr.bf16.mxu0 0
  %762 = vmatpush1.bf16.msra.mxu0 0
  %763 = vmatprep.subr.bf16.mxu0 0
  %764 = vmatpush1.bf16.msra.mxu0 0
  %765 = vmatprep.subr.bf16.mxu0 0
  %766 = vmatpush1.bf16.msra.mxu0 0
  %767 = vmatprep.mubr.bf16.mxu0 0
  %768 = vmatmul.mubr.bf16.gmra.mrb[0].mxu0 %v651
  %v769 = vpop.f32.mrb[0].mxu0
  %v770 = vadd.f32 0.0, %v769
  %v771 = vpop.f32.mrb[0].mxu0
  %v772 = vpop.f32.mrb[0].mxu0
  %v773 = vpop.f32.mrb[0].mxu0
  %774 = vdwg.mxu0
  %v775 = vadd.f32 %v154, %v770
  %v776 = vtanh.pop %v775
  %v777 = vpack.c.bf16 %v776, %v776
  %v778 = vpack.c.bf16 %v734, %v734
  %779 = vmatprep.subr.bf16.mxu0 0
  %780 = vmatpush1.bf16.msra.mxu0 %v337
  %781 = vmatprep.subr.bf16.mxu0 0
  %782 = vmatpush1.bf16.msra.mxu0 %v338
  %783 = vmatprep.subr.bf16.mxu0 0
  %784 = vmatpush1.bf16.msra.mxu0 %v339
  %785 = vmatprep.subr.bf16.mxu0 0
  %786 = vmatpush1.bf16.msra.mxu0 %v340
  %787 = vmatprep.subr.bf16.mxu0 0
  %788 = vmatpush1.bf16.msra.mxu0 %v341
  %789 = vmatprep.subr.bf16.mxu0 0
  %790 = vmatpush1.bf16.msra.mxu0 %v342
  %791 = vmatprep.subr.bf16.mxu0 0
  %792 = vmatpush1.bf16.msra.mxu0 %v343
  %793 = vmatprep.subr.bf16.mxu0 0
  %794 = vmatpush1.bf16.msra.mxu0 %v344
  %795 = vmatprep.subr.bf16.mxu0 0
  %796 = vmatpush1.bf16.msra.mxu0 0
  %797 = vmatprep.subr.bf16.mxu0 0
  %798 = vmatpush1.bf16.msra.mxu0 0
  %799 = vmatprep.subr.bf16.mxu0 0
  %800 = vmatpush1.bf16.msra.mxu0 0
  %801 = vmatprep.subr.bf16.mxu0 0
  %802 = vmatpush1.bf16.msra.mxu0 0
  %803 = vmatprep.subr.bf16.mxu0 0
  %804 = vmatpush1.bf16.msra.mxu0 0
  %805 = vmatprep.subr.bf16.mxu0 0
  %806 = vmatpush1.bf16.msra.mxu0 0
  %807 = vmatprep.subr.bf16.mxu0 0
  %808 = vmatpush1.bf16.msra.mxu0 0
  %809 = vmatprep.subr.bf16.mxu0 0
  %810 = vmatpush1.bf16.msra.mxu0 0
  %811 = vmatprep.mubr.bf16.mxu0 0
  %812 = vmatmul.mubr.bf16.gmra.mrb[0].mxu0 %v778
  %v813 = vpop.f32.mrb[0].mxu0
  %v814 = vadd.f32 0.0, %v813
  %v815 = vpop.f32.mrb[0].mxu0
  %v816 = vpop.f32.mrb[0].mxu0
  %v817 = vpop.f32.mrb[0].mxu0
  %818 = vdwg.mxu0
  %819 = vmatprep.subr.bf16.mxu0 0
  %820 = vmatpush1.bf16.msra.mxu0 %v425
  %821 = vmatprep.subr.bf16.mxu0 0
  %822 = vmatpush1.bf16.msra.mxu0 %v426
  %823 = vmatprep.subr.bf16.mxu0 0
  %824 = vmatpush1.bf16.msra.mxu0 %v427
  %825 = vmatprep.subr.bf16.mxu0 0
  %826 = vmatpush1.bf16.msra.mxu0 %v428
  %827 = vmatprep.subr.bf16.mxu0 0
  %828 = vmatpush1.bf16.msra.mxu0 %v429
  %829 = vmatprep.subr.bf16.mxu0 0
  %830 = vmatpush1.bf16.msra.mxu0 %v430
  %831 = vmatprep.subr.bf16.mxu0 0
  %832 = vmatpush1.bf16.msra.mxu0 %v431
  %833 = vmatprep.subr.bf16.mxu0 0
  %834 = vmatpush1.bf16.msra.mxu0 %v432
  %835 = vmatprep.subr.bf16.mxu0 0
  %836 = vmatpush1.bf16.msra.mxu0 0
  %837 = vmatprep.subr.bf16.mxu0 0
  %838 = vmatpush1.bf16.msra.mxu0 0
  %839 = vmatprep.subr.bf16.mxu0 0
  %840 = vmatpush1.bf16.msra.mxu0 0
  %841 = vmatprep.subr.bf16.mxu0 0
  %842 = vmatpush1.bf16.msra.mxu0 0
  %843 = vmatprep.subr.bf16.mxu0 0
  %844 = vmatpush1.bf16.msra.mxu0 0
  %845 = vmatprep.subr.bf16.mxu0 0
  %846 = vmatpush1.bf16.msra.mxu0 0
  %847 = vmatprep.subr.bf16.mxu0 0
  %848 = vmatpush1.bf16.msra.mxu0 0
  %849 = vmatprep.subr.bf16.mxu0 0
  %850 = vmatpush1.bf16.msra.mxu0 0
  %851 = vmatprep.mubr.bf16.mxu0 0
  %852 = vmatmul.mubr.bf16.gmra.mrb[0].mxu0 %v777
  %v853 = vpop.f32.mrb[0].mxu0
  %v854 = vadd.f32 %v814, %v853
  %v855 = vpop.f32.mrb[0].mxu0
  %v856 = vpop.f32.mrb[0].mxu0
  %v857 = vpop.f32.mrb[0].mxu0
  %858 = vdwg.mxu0
  %v859 = vadd.f32 %v854, %v212
  %v860 = vtanh.pop %v859
  %861 = vmatprep.subr.bf16.mxu0 0
  %862 = vmatpush1.bf16.msra.mxu0 %v246
  %863 = vmatprep.subr.bf16.mxu0 0
  %864 = vmatpush1.bf16.msra.mxu0 %v247
  %865 = vmatprep.subr.bf16.mxu0 0
  %866 = vmatpush1.bf16.msra.mxu0 %v248
  %867 = vmatprep.subr.bf16.mxu0 0
  %868 = vmatpush1.bf16.msra.mxu0 %v249
  %869 = vmatprep.subr.bf16.mxu0 0
  %870 = vmatpush1.bf16.msra.mxu0 %v250
  %871 = vmatprep.subr.bf16.mxu0 0
  %872 = vmatpush1.bf16.msra.mxu0 %v251
  %873 = vmatprep.subr.bf16.mxu0 0
  %874 = vmatpush1.bf16.msra.mxu0 %v252
  %875 = vmatprep.subr.bf16.mxu0 0
  %876 = vmatpush1.bf16.msra.mxu0 %v253
  %877 = vmatprep.subr.bf16.mxu0 0
  %878 = vmatpush1.bf16.msra.mxu0 0
  %879 = vmatprep.subr.bf16.mxu0 0
  %880 = vmatpush1.bf16.msra.mxu0 0
  %881 = vmatprep.subr.bf16.mxu0 0
  %882 = vmatpush1.bf16.msra.mxu0 0
  %883 = vmatprep.subr.bf16.mxu0 0
  %884 = vmatpush1.bf16.msra.mxu0 0
  %885 = vmatprep.subr.bf16.mxu0 0
  %886 = vmatpush1.bf16.msra.mxu0 0
  %887 = vmatprep.subr.bf16.mxu0 0
  %888 = vmatpush1.bf16.msra.mxu0 0
  %889 = vmatprep.subr.bf16.mxu0 0
  %890 = vmatpush1.bf16.msra.mxu0 0
  %891 = vmatprep.subr.bf16.mxu0 0
  %892 = vmatpush1.bf16.msra.mxu0 0
  %893 = vmatprep.mubr.bf16.mxu0 0
  %894 = vmatmul.mubr.bf16.gmra.mrb[0].mxu0 %v777
  %v895 = vpop.f32.mrb[0].mxu0
  %v896 = vadd.f32 0.0, %v895
  %v897 = vpop.f32.mrb[0].mxu0
  %v898 = vpop.f32.mrb[0].mxu0
  %v899 = vpop.f32.mrb[0].mxu0
  %900 = vdwg.mxu0
  %v901 = vadd.f32 %v155, %v896
  %v902 = vtanh.pop %v901
  %v903 = vpack.c.bf16 %v902, %v902
  %v904 = vpack.c.bf16 %v860, %v860
  %905 = vmatprep.subr.bf16.mxu0 0
  %906 = vmatpush1.bf16.msra.mxu0 %v337
  %907 = vmatprep.subr.bf16.mxu0 0
  %908 = vmatpush1.bf16.msra.mxu0 %v338
  %909 = vmatprep.subr.bf16.mxu0 0
  %910 = vmatpush1.bf16.msra.mxu0 %v339
  %911 = vmatprep.subr.bf16.mxu0 0
  %912 = vmatpush1.bf16.msra.mxu0 %v340
  %913 = vmatprep.subr.bf16.mxu0 0
  %914 = vmatpush1.bf16.msra.mxu0 %v341
  %915 = vmatprep.subr.bf16.mxu0 0
  %916 = vmatpush1.bf16.msra.mxu0 %v342
  %917 = vmatprep.subr.bf16.mxu0 0
  %918 = vmatpush1.bf16.msra.mxu0 %v343
  %919 = vmatprep.subr.bf16.mxu0 0
  %920 = vmatpush1.bf16.msra.mxu0 %v344
  %921 = vmatprep.subr.bf16.mxu0 0
  %922 = vmatpush1.bf16.msra.mxu0 0
  %923 = vmatprep.subr.bf16.mxu0 0
  %924 = vmatpush1.bf16.msra.mxu0 0
  %925 = vmatprep.subr.bf16.mxu0 0
  %926 = vmatpush1.bf16.msra.mxu0 0
  %927 = vmatprep.subr.bf16.mxu0 0
  %928 = vmatpush1.bf16.msra.mxu0 0
  %929 = vmatprep.subr.bf16.mxu0 0
  %930 = vmatpush1.bf16.msra.mxu0 0
  %931 = vmatprep.subr.bf16.mxu0 0
  %932 = vmatpush1.bf16.msra.mxu0 0
  %933 = vmatprep.subr.bf16.mxu0 0
  %934 = vmatpush1.bf16.msra.mxu0 0
  %935 = vmatprep.subr.bf16.mxu0 0
  %936 = vmatpush1.bf16.msra.mxu0 0
  %937 = vmatprep.mubr.bf16.mxu0 0
  %938 = vmatmul.mubr.bf16.gmra.mrb[0].mxu0 %v904
  %v939 = vpop.f32.mrb[0].mxu0
  %v940 = vadd.f32 0.0, %v939
  %v941 = vpop.f32.mrb[0].mxu0
  %v942 = vpop.f32.mrb[0].mxu0
  %v943 = vpop.f32.mrb[0].mxu0
  %944 = vdwg.mxu0
  %945 = vmatprep.subr.bf16.mxu0 0
  %946 = vmatpush1.bf16.msra.mxu0 %v425
  %947 = vmatprep.subr.bf16.mxu0 0
  %948 = vmatpush1.bf16.msra.mxu0 %v426
  %949 = vmatprep.subr.bf16.mxu0 0
  %950 = vmatpush1.bf16.msra.mxu0 %v427
  %951 = vmatprep.subr.bf16.mxu0 0
  %952 = vmatpush1.bf16.msra.mxu0 %v428
  %953 = vmatprep.subr.bf16.mxu0 0
  %954 = vmatpush1.bf16.msra.mxu0 %v429
  %955 = vmatprep.subr.bf16.mxu0 0
  %956 = vmatpush1.bf16.msra.mxu0 %v430
  %957 = vmatprep.subr.bf16.mxu0 0
  %958 = vmatpush1.bf16.msra.mxu0 %v431
  %959 = vmatprep.subr.bf16.mxu0 0
  %960 = vmatpush1.bf16.msra.mxu0 %v432
  %961 = vmatprep.subr.bf16.mxu0 0
  %962 = vmatpush1.bf16.msra.mxu0 0
  %963 = vmatprep.subr.bf16.mxu0 0
  %964 = vmatpush1.bf16.msra.mxu0 0
  %965 = vmatprep.subr.bf16.mxu0 0
  %966 = vmatpush1.bf16.msra.mxu0 0
  %967 = vmatprep.subr.bf16.mxu0 0
  %968 = vmatpush1.bf16.msra.mxu0 0
  %969 = vmatprep.subr.bf16.mxu0 0
  %970 = vmatpush1.bf16.msra.mxu0 0
  %971 = vmatprep.subr.bf16.mxu0 0
  %972 = vmatpush1.bf16.msra.mxu0 0
  %973 = vmatprep.subr.bf16.mxu0 0
  %974 = vmatpush1.bf16.msra.mxu0 0
  %975 = vmatprep.subr.bf16.mxu0 0
  %976 = vmatpush1.bf16.msra.mxu0 0
  %977 = vmatprep.mubr.bf16.mxu0 0
  %978 = vmatmul.mubr.bf16.gmra.mrb[0].mxu0 %v903
  %v979 = vpop.f32.mrb[0].mxu0
  %v980 = vadd.f32 %v940, %v979
  %v981 = vpop.f32.mrb[0].mxu0
  %v982 = vpop.f32.mrb[0].mxu0
  %v983 = vpop.f32.mrb[0].mxu0
  %984 = vdwg.mxu0
  %v985 = vadd.f32 %v980, %v212
  %v986 = vtanh.pop %v985
  %987 = vmatprep.subr.bf16.mxu0 0
  %988 = vmatpush1.bf16.msra.mxu0 %v246
  %989 = vmatprep.subr.bf16.mxu0 0
  %990 = vmatpush1.bf16.msra.mxu0 %v247
  %991 = vmatprep.subr.bf16.mxu0 0
  %992 = vmatpush1.bf16.msra.mxu0 %v248
  %993 = vmatprep.subr.bf16.mxu0 0
  %994 = vmatpush1.bf16.msra.mxu0 %v249
  %995 = vmatprep.subr.bf16.mxu0 0
  %996 = vmatpush1.bf16.msra.mxu0 %v250
  %997 = vmatprep.subr.bf16.mxu0 0
  %998 = vmatpush1.bf16.msra.mxu0 %v251
  %999 = vmatprep.subr.bf16.mxu0 0
  %1000 = vmatpush1.bf16.msra.mxu0 %v252
  %1001 = vmatprep.subr.bf16.mxu0 0
  %1002 = vmatpush1.bf16.msra.mxu0 %v253
  %1003 = vmatprep.subr.bf16.mxu0 0
  %1004 = vmatpush1.bf16.msra.mxu0 0
  %1005 = vmatprep.subr.bf16.mxu0 0
  %1006 = vmatpush1.bf16.msra.mxu0 0
  %1007 = vmatprep.subr.bf16.mxu0 0
  %1008 = vmatpush1.bf16.msra.mxu0 0
  %1009 = vmatprep.subr.bf16.mxu0 0
  %1010 = vmatpush1.bf16.msra.mxu0 0
  %1011 = vmatprep.subr.bf16.mxu0 0
  %1012 = vmatpush1.bf16.msra.mxu0 0
  %1013 = vmatprep.subr.bf16.mxu0 0
  %1014 = vmatpush1.bf16.msra.mxu0 0
  %1015 = vmatprep.subr.bf16.mxu0 0
  %1016 = vmatpush1.bf16.msra.mxu0 0
  %1017 = vmatprep.subr.bf16.mxu0 0
  %1018 = vmatpush1.bf16.msra.mxu0 0
  %1019 = vmatprep.mubr.bf16.mxu0 0
  %1020 = vmatmul.mubr.bf16.gmra.mrb[0].mxu0 %v903
  %v1021 = vpop.f32.mrb[0].mxu0
  %v1022 = vadd.f32 0.0, %v1021
  %v1023 = vpop.f32.mrb[0].mxu0
  %v1024 = vpop.f32.mrb[0].mxu0
  %v1025 = vpop.f32.mrb[0].mxu0
  %1026 = vdwg.mxu0
  %v1027 = vadd.f32 %v156, %v1022
  %v1028 = vtanh.pop %v1027
  %v1029 = vpack.c.bf16 %v1028, %v1028
  %v1030 = vpack.c.bf16 %v986, %v986
  %1031 = vmatprep.subr.bf16.mxu0 0
  %1032 = vmatpush1.bf16.msra.mxu0 %v337
  %1033 = vmatprep.subr.bf16.mxu0 0
  %1034 = vmatpush1.bf16.msra.mxu0 %v338
  %1035 = vmatprep.subr.bf16.mxu0 0
  %1036 = vmatpush1.bf16.msra.mxu0 %v339
  %1037 = vmatprep.subr.bf16.mxu0 0
  %1038 = vmatpush1.bf16.msra.mxu0 %v340
  %1039 = vmatprep.subr.bf16.mxu0 0
  %1040 = vmatpush1.bf16.msra.mxu0 %v341
  %1041 = vmatprep.subr.bf16.mxu0 0
  %1042 = vmatpush1.bf16.msra.mxu0 %v342
  %1043 = vmatprep.subr.bf16.mxu0 0
  %1044 = vmatpush1.bf16.msra.mxu0 %v343
  %1045 = vmatprep.subr.bf16.mxu0 0
  %1046 = vmatpush1.bf16.msra.mxu0 %v344
  %1047 = vmatprep.subr.bf16.mxu0 0
  %1048 = vmatpush1.bf16.msra.mxu0 0
  %1049 = vmatprep.subr.bf16.mxu0 0
  %1050 = vmatpush1.bf16.msra.mxu0 0
  %1051 = vmatprep.subr.bf16.mxu0 0
  %1052 = vmatpush1.bf16.msra.mxu0 0
  %1053 = vmatprep.subr.bf16.mxu0 0
  %1054 = vmatpush1.bf16.msra.mxu0 0
  %1055 = vmatprep.subr.bf16.mxu0 0
  %1056 = vmatpush1.bf16.msra.mxu0 0
  %1057 = vmatprep.subr.bf16.mxu0 0
  %1058 = vmatpush1.bf16.msra.mxu0 0
  %1059 = vmatprep.subr.bf16.mxu0 0
  %1060 = vmatpush1.bf16.msra.mxu0 0
  %1061 = vmatprep.subr.bf16.mxu0 0
  %1062 = vmatpush1.bf16.msra.mxu0 0
  %1063 = vmatprep.mubr.bf16.mxu0 0
  %1064 = vmatmul.mubr.bf16.gmra.mrb[0].mxu0 %v1030
  %v1065 = vpop.f32.mrb[0].mxu0
  %v1066 = vadd.f32 0.0, %v1065
  %v1067 = vpop.f32.mrb[0].mxu0
  %v1068 = vpop.f32.mrb[0].mxu0
  %v1069 = vpop.f32.mrb[0].mxu0
  %1070 = vdwg.mxu0
  %1071 = vmatprep.subr.bf16.mxu0 0
  %1072 = vmatpush1.bf16.msra.mxu0 %v425
  %1073 = vmatprep.subr.bf16.mxu0 0
  %1074 = vmatpush1.bf16.msra.mxu0 %v426
  %1075 = vmatprep.subr.bf16.mxu0 0
  %1076 = vmatpush1.bf16.msra.mxu0 %v427
  %1077 = vmatprep.subr.bf16.mxu0 0
  %1078 = vmatpush1.bf16.msra.mxu0 %v428
  %1079 = vmatprep.subr.bf16.mxu0 0
  %1080 = vmatpush1.bf16.msra.mxu0 %v429
  %1081 = vmatprep.subr.bf16.mxu0 0
  %1082 = vmatpush1.bf16.msra.mxu0 %v430
  %1083 = vmatprep.subr.bf16.mxu0 0
  %1084 = vmatpush1.bf16.msra.mxu0 %v431
  %1085 = vmatprep.subr.bf16.mxu0 0
  %1086 = vmatpush1.bf16.msra.mxu0 %v432
  %1087 = vmatprep.subr.bf16.mxu0 0
  %1088 = vmatpush1.bf16.msra.mxu0 0
  %1089 = vmatprep.subr.bf16.mxu0 0
  %1090 = vmatpush1.bf16.msra.mxu0 0
  %1091 = vmatprep.subr.bf16.mxu0 0
  %1092 = vmatpush1.bf16.msra.mxu0 0
  %1093 = vmatprep.subr.bf16.mxu0 0
  %1094 = vmatpush1.bf16.msra.mxu0 0
  %1095 = vmatprep.subr.bf16.mxu0 0
  %1096 = vmatpush1.bf16.msra.mxu0 0
  %1097 = vmatprep.subr.bf16.mxu0 0
  %1098 = vmatpush1.bf16.msra.mxu0 0
  %1099 = vmatprep.subr.bf16.mxu0 0
  %1100 = vmatpush1.bf16.msra.mxu0 0
  %1101 = vmatprep.subr.bf16.mxu0 0
  %1102 = vmatpush1.bf16.msra.mxu0 0
  %1103 = vmatprep.mubr.bf16.mxu0 0
  %1104 = vmatmul.mubr.bf16.gmra.mrb[0].mxu0 %v1029
  %v1105 = vpop.f32.mrb[0].mxu0
  %v1106 = vadd.f32 %v1066, %v1105
  %v1107 = vpop.f32.mrb[0].mxu0
  %v1108 = vpop.f32.mrb[0].mxu0
  %v1109 = vpop.f32.mrb[0].mxu0
  %1110 = vdwg.mxu0
  %v1111 = vadd.f32 %v1106, %v212
  %v1112 = vtanh.pop %v1111
  %1113 = vmatprep.subr.bf16.mxu0 0
  %1114 = vmatpush1.bf16.msra.mxu0 %v246
  %1115 = vmatprep.subr.bf16.mxu0 0
  %1116 = vmatpush1.bf16.msra.mxu0 %v247
  %1117 = vmatprep.subr.bf16.mxu0 0
  %1118 = vmatpush1.bf16.msra.mxu0 %v248
  %1119 = vmatprep.subr.bf16.mxu0 0
  %1120 = vmatpush1.bf16.msra.mxu0 %v249
  %1121 = vmatprep.subr.bf16.mxu0 0
  %1122 = vmatpush1.bf16.msra.mxu0 %v250
  %1123 = vmatprep.subr.bf16.mxu0 0
  %1124 = vmatpush1.bf16.msra.mxu0 %v251
  %1125 = vmatprep.subr.bf16.mxu0 0
  %1126 = vmatpush1.bf16.msra.mxu0 %v252
  %1127 = vmatprep.subr.bf16.mxu0 0
  %1128 = vmatpush1.bf16.msra.mxu0 %v253
  %1129 = vmatprep.subr.bf16.mxu0 0
  %1130 = vmatpush1.bf16.msra.mxu0 0
  %1131 = vmatprep.subr.bf16.mxu0 0
  %1132 = vmatpush1.bf16.msra.mxu0 0
  %1133 = vmatprep.subr.bf16.mxu0 0
  %1134 = vmatpush1.bf16.msra.mxu0 0
  %1135 = vmatprep.subr.bf16.mxu0 0
  %1136 = vmatpush1.bf16.msra.mxu0 0
  %1137 = vmatprep.subr.bf16.mxu0 0
  %1138 = vmatpush1.bf16.msra.mxu0 0
  %1139 = vmatprep.subr.bf16.mxu0 0
  %1140 = vmatpush1.bf16.msra.mxu0 0
  %1141 = vmatprep.subr.bf16.mxu0 0
  %1142 = vmatpush1.bf16.msra.mxu0 0
  %1143 = vmatprep.subr.bf16.mxu0 0
  %1144 = vmatpush1.bf16.msra.mxu0 0
  %1145 = vmatprep.mubr.bf16.mxu0 0
  %1146 = vmatmul.mubr.bf16.gmra.mrb[0].mxu0 %v1029
  %v1147 = vpop.f32.mrb[0].mxu0
  %v1148 = vadd.f32 0.0, %v1147
  %v1149 = vpop.f32.mrb[0].mxu0
  %v1150 = vpop.f32.mrb[0].mxu0
  %v1151 = vpop.f32.mrb[0].mxu0
  %1152 = vdwg.mxu0
  %v1153 = vadd.f32 %v157, %v1148
  %v1154 = vtanh.pop %v1153
  %v1155 = vpack.c.bf16 %v1154, %v1154
  %v1156 = vpack.c.bf16 %v1112, %v1112
  %1157 = vmatprep.subr.bf16.mxu0 0
  %1158 = vmatpush1.bf16.msra.mxu0 %v337
  %1159 = vmatprep.subr.bf16.mxu0 0
  %1160 = vmatpush1.bf16.msra.mxu0 %v338
  %1161 = vmatprep.subr.bf16.mxu0 0
  %1162 = vmatpush1.bf16.msra.mxu0 %v339
  %1163 = vmatprep.subr.bf16.mxu0 0
  %1164 = vmatpush1.bf16.msra.mxu0 %v340
  %1165 = vmatprep.subr.bf16.mxu0 0
  %1166 = vmatpush1.bf16.msra.mxu0 %v341
  %1167 = vmatprep.subr.bf16.mxu0 0
  %1168 = vmatpush1.bf16.msra.mxu0 %v342
  %1169 = vmatprep.subr.bf16.mxu0 0
  %1170 = vmatpush1.bf16.msra.mxu0 %v343
  %1171 = vmatprep.subr.bf16.mxu0 0
  %1172 = vmatpush1.bf16.msra.mxu0 %v344
  %1173 = vmatprep.subr.bf16.mxu0 0
  %1174 = vmatpush1.bf16.msra.mxu0 0
  %1175 = vmatprep.subr.bf16.mxu0 0
  %1176 = vmatpush1.bf16.msra.mxu0 0
  %1177 = vmatprep.subr.bf16.mxu0 0
  %1178 = vmatpush1.bf16.msra.mxu0 0
  %1179 = vmatprep.subr.bf16.mxu0 0
  %1180 = vmatpush1.bf16.msra.mxu0 0
  %1181 = vmatprep.subr.bf16.mxu0 0
  %1182 = vmatpush1.bf16.msra.mxu0 0
  %1183 = vmatprep.subr.bf16.mxu0 0
  %1184 = vmatpush1.bf16.msra.mxu0 0
  %1185 = vmatprep.subr.bf16.mxu0 0
  %1186 = vmatpush1.bf16.msra.mxu0 0
  %1187 = vmatprep.subr.bf16.mxu0 0
  %1188 = vmatpush1.bf16.msra.mxu0 0
  %1189 = vmatprep.mubr.bf16.mxu0 0
  %1190 = vmatmul.mubr.bf16.gmra.mrb[0].mxu0 %v1156
  %v1191 = vpop.f32.mrb[0].mxu0
  %v1192 = vadd.f32 0.0, %v1191
  %v1193 = vpop.f32.mrb[0].mxu0
  %v1194 = vpop.f32.mrb[0].mxu0
  %v1195 = vpop.f32.mrb[0].mxu0
  %1196 = vdwg.mxu0
  %1197 = vmatprep.subr.bf16.mxu0 0
  %1198 = vmatpush1.bf16.msra.mxu0 %v425
  %1199 = vmatprep.subr.bf16.mxu0 0
  %1200 = vmatpush1.bf16.msra.mxu0 %v426
  %1201 = vmatprep.subr.bf16.mxu0 0
  %1202 = vmatpush1.bf16.msra.mxu0 %v427
  %1203 = vmatprep.subr.bf16.mxu0 0
  %1204 = vmatpush1.bf16.msra.mxu0 %v428
  %1205 = vmatprep.subr.bf16.mxu0 0
  %1206 = vmatpush1.bf16.msra.mxu0 %v429
  %1207 = vmatprep.subr.bf16.mxu0 0
  %1208 = vmatpush1.bf16.msra.mxu0 %v430
  %1209 = vmatprep.subr.bf16.mxu0 0
  %1210 = vmatpush1.bf16.msra.mxu0 %v431
  %1211 = vmatprep.subr.bf16.mxu0 0
  %1212 = vmatpush1.bf16.msra.mxu0 %v432
  %1213 = vmatprep.subr.bf16.mxu0 0
  %1214 = vmatpush1.bf16.msra.mxu0 0
  %1215 = vmatprep.subr.bf16.mxu0 0
  %1216 = vmatpush1.bf16.msra.mxu0 0
  %1217 = vmatprep.subr.bf16.mxu0 0
  %1218 = vmatpush1.bf16.msra.mxu0 0
  %1219 = vmatprep.subr.bf16.mxu0 0
  %1220 = vmatpush1.bf16.msra.mxu0 0
  %1221 = vmatprep.subr.bf16.mxu0 0
  %1222 = vmatpush1.bf16.msra.mxu0 0
  %1223 = vmatprep.subr.bf16.mxu0 0
  %1224 = vmatpush1.bf16.msra.mxu0 0
  %1225 = vmatprep.subr.bf16.mxu0 0
  %1226 = vmatpush1.bf16.msra.mxu0 0
  %1227 = vmatprep.subr.bf16.mxu0 0
  %1228 = vmatpush1.bf16.msra.mxu0 0
  %1229 = vmatprep.mubr.bf16.mxu0 0
  %1230 = vmatmul.mubr.bf16.gmra.mrb[0].mxu0 %v1155
  %v1231 = vpop.f32.mrb[0].mxu0
  %v1232 = vadd.f32 %v1192, %v1231
  %v1233 = vpop.f32.mrb[0].mxu0
  %v1234 = vpop.f32.mrb[0].mxu0
  %v1235 = vpop.f32.mrb[0].mxu0
  %1236 = vdwg.mxu0
  %v1237 = vadd.f32 %v1232, %v212
  %v1238 = vtanh.pop %v1237
  %1239 = vmatprep.subr.bf16.mxu0 0
  %1240 = vmatpush1.bf16.msra.mxu0 %v246
  %1241 = vmatprep.subr.bf16.mxu0 0
  %1242 = vmatpush1.bf16.msra.mxu0 %v247
  %1243 = vmatprep.subr.bf16.mxu0 0
  %1244 = vmatpush1.bf16.msra.mxu0 %v248
  %1245 = vmatprep.subr.bf16.mxu0 0
  %1246 = vmatpush1.bf16.msra.mxu0 %v249
  %1247 = vmatprep.subr.bf16.mxu0 0
  %1248 = vmatpush1.bf16.msra.mxu0 %v250
  %1249 = vmatprep.subr.bf16.mxu0 0
  %1250 = vmatpush1.bf16.msra.mxu0 %v251
  %1251 = vmatprep.subr.bf16.mxu0 0
  %1252 = vmatpush1.bf16.msra.mxu0 %v252
  %1253 = vmatprep.subr.bf16.mxu0 0
  %1254 = vmatpush1.bf16.msra.mxu0 %v253
  %1255 = vmatprep.subr.bf16.mxu0 0
  %1256 = vmatpush1.bf16.msra.mxu0 0
  %1257 = vmatprep.subr.bf16.mxu0 0
  %1258 = vmatpush1.bf16.msra.mxu0 0
  %1259 = vmatprep.subr.bf16.mxu0 0
  %1260 = vmatpush1.bf16.msra.mxu0 0
  %1261 = vmatprep.subr.bf16.mxu0 0
  %1262 = vmatpush1.bf16.msra.mxu0 0
  %1263 = vmatprep.subr.bf16.mxu0 0
  %1264 = vmatpush1.bf16.msra.mxu0 0
  %1265 = vmatprep.subr.bf16.mxu0 0
  %1266 = vmatpush1.bf16.msra.mxu0 0
  %1267 = vmatprep.subr.bf16.mxu0 0
  %1268 = vmatpush1.bf16.msra.mxu0 0
  %1269 = vmatprep.subr.bf16.mxu0 0
  %1270 = vmatpush1.bf16.msra.mxu0 0
  %1271 = vmatprep.mubr.bf16.mxu0 0
  %1272 = vmatmul.mubr.bf16.gmra.mrb[0].mxu0 %v1155
  %v1273 = vpop.f32.mrb[0].mxu0
  %v1274 = vadd.f32 0.0, %v1273
  %v1275 = vpop.f32.mrb[0].mxu0
  %v1276 = vpop.f32.mrb[0].mxu0
  %v1277 = vpop.f32.mrb[0].mxu0
  %1278 = vdwg.mxu0
  %v1279 = vadd.f32 %v158, %v1274
  %v1280 = vtanh.pop %v1279
  %v1281 = vpack.c.bf16 %v1280, %v1280
  %v1282 = vpack.c.bf16 %v1238, %v1238
  %1283 = vmatprep.subr.bf16.mxu0 0
  %1284 = vmatpush1.bf16.msra.mxu0 %v337
  %1285 = vmatprep.subr.bf16.mxu0 0
  %1286 = vmatpush1.bf16.msra.mxu0 %v338
  %1287 = vmatprep.subr.bf16.mxu0 0
  %1288 = vmatpush1.bf16.msra.mxu0 %v339
  %1289 = vmatprep.subr.bf16.mxu0 0
  %1290 = vmatpush1.bf16.msra.mxu0 %v340
  %1291 = vmatprep.subr.bf16.mxu0 0
  %1292 = vmatpush1.bf16.msra.mxu0 %v341
  %1293 = vmatprep.subr.bf16.mxu0 0
  %1294 = vmatpush1.bf16.msra.mxu0 %v342
  %1295 = vmatprep.subr.bf16.mxu0 0
  %1296 = vmatpush1.bf16.msra.mxu0 %v343
  %1297 = vmatprep.subr.bf16.mxu0 0
  %1298 = vmatpush1.bf16.msra.mxu0 %v344
  %1299 = vmatprep.subr.bf16.mxu0 0
  %1300 = vmatpush1.bf16.msra.mxu0 0
  %1301 = vmatprep.subr.bf16.mxu0 0
  %1302 = vmatpush1.bf16.msra.mxu0 0
  %1303 = vmatprep.subr.bf16.mxu0 0
  %1304 = vmatpush1.bf16.msra.mxu0 0
  %1305 = vmatprep.subr.bf16.mxu0 0
  %1306 = vmatpush1.bf16.msra.mxu0 0
  %1307 = vmatprep.subr.bf16.mxu0 0
  %1308 = vmatpush1.bf16.msra.mxu0 0
  %1309 = vmatprep.subr.bf16.mxu0 0
  %1310 = vmatpush1.bf16.msra.mxu0 0
  %1311 = vmatprep.subr.bf16.mxu0 0
  %1312 = vmatpush1.bf16.msra.mxu0 0
  %1313 = vmatprep.subr.bf16.mxu0 0
  %1314 = vmatpush1.bf16.msra.mxu0 0
  %1315 = vmatprep.mubr.bf16.mxu0 0
  %1316 = vmatmul.mubr.bf16.gmra.mrb[0].mxu0 %v1282
  %v1317 = vpop.f32.mrb[0].mxu0
  %v1318 = vadd.f32 0.0, %v1317
  %v1319 = vpop.f32.mrb[0].mxu0
  %v1320 = vpop.f32.mrb[0].mxu0
  %v1321 = vpop.f32.mrb[0].mxu0
  %1322 = vdwg.mxu0
  %1323 = vmatprep.subr.bf16.mxu0 0
  %1324 = vmatpush1.bf16.msra.mxu0 %v425
  %1325 = vmatprep.subr.bf16.mxu0 0
  %1326 = vmatpush1.bf16.msra.mxu0 %v426
  %1327 = vmatprep.subr.bf16.mxu0 0
  %1328 = vmatpush1.bf16.msra.mxu0 %v427
  %1329 = vmatprep.subr.bf16.mxu0 0
  %1330 = vmatpush1.bf16.msra.mxu0 %v428
  %1331 = vmatprep.subr.bf16.mxu0 0
  %1332 = vmatpush1.bf16.msra.mxu0 %v429
  %1333 = vmatprep.subr.bf16.mxu0 0
  %1334 = vmatpush1.bf16.msra.mxu0 %v430
  %1335 = vmatprep.subr.bf16.mxu0 0
  %1336 = vmatpush1.bf16.msra.mxu0 %v431
  %1337 = vmatprep.subr.bf16.mxu0 0
  %1338 = vmatpush1.bf16.msra.mxu0 %v432
  %1339 = vmatprep.subr.bf16.mxu0 0
  %1340 = vmatpush1.bf16.msra.mxu0 0
  %1341 = vmatprep.subr.bf16.mxu0 0
  %1342 = vmatpush1.bf16.msra.mxu0 0
  %1343 = vmatprep.subr.bf16.mxu0 0
  %1344 = vmatpush1.bf16.msra.mxu0 0
  %1345 = vmatprep.subr.bf16.mxu0 0
  %1346 = vmatpush1.bf16.msra.mxu0 0
  %1347 = vmatprep.subr.bf16.mxu0 0
  %1348 = vmatpush1.bf16.msra.mxu0 0
  %1349 = vmatprep.subr.bf16.mxu0 0
  %1350 = vmatpush1.bf16.msra.mxu0 0
  %1351 = vmatprep.subr.bf16.mxu0 0
  %1352 = vmatpush1.bf16.msra.mxu0 0
  %1353 = vmatprep.subr.bf16.mxu0 0
  %1354 = vmatpush1.bf16.msra.mxu0 0
  %1355 = vmatprep.mubr.bf16.mxu0 0
  %1356 = vmatmul.mubr.bf16.gmra.mrb[0].mxu0 %v1281
  %v1357 = vpop.f32.mrb[0].mxu0
  %v1358 = vadd.f32 %v1318, %v1357
  %v1359 = vpop.f32.mrb[0].mxu0
  %v1360 = vpop.f32.mrb[0].mxu0
  %v1361 = vpop.f32.mrb[0].mxu0
  %1362 = vdwg.mxu0
  %v1363 = vadd.f32 %v1358, %v212
  %v1364 = vtanh.pop %v1363
  %v1365 = vpack.c.bf16 %v1364, %v1364
  %v1366 = vld [vmem:[%s7] sm:$0xf]
  %v1367 = vld [vmem:[%s7 + $0x4] sm:$0xf]
  %v1368 = vld [vmem:[%s7 + $0x8] sm:$0xf]
  %v1369 = vld [vmem:[%s7 + $0xc] sm:$0xf]
  %v1370 = vld [vmem:[%s7 + $0x10] sm:$0xf]
  %v1371 = vld [vmem:[%s7 + $0x14] sm:$0xf]
  %v1372 = vld [vmem:[%s7 + $0x18] sm:$0xf]
  %v1373 = vld [vmem:[%s7 + $0x1c] sm:$0xf]
  %v1374 = vld [vmem:[%s7 + $0x20] sm:$0xf]
  %v1375 = vld [vmem:[%s7 + $0x24] sm:$0xf]
  %v1376 = vld [vmem:[%s7 + $0x28] sm:$0xf]
  %v1377 = vld [vmem:[%s7 + $0x2c] sm:$0xf]
  %v1378 = vld [vmem:[%s7 + $0x30] sm:$0xf]
  %v1379 = vld [vmem:[%s7 + $0x34] sm:$0xf]
  %v1380 = vld [vmem:[%s7 + $0x38] sm:$0xf]
  %v1381 = vld [vmem:[%s7 + $0x3c] sm:$0xf]
  %v1382 = vld [vmem:[%s8] sm:$0x1]
  %v1384 = vlaneseq
  %v1385 = vshrl.u32 %v1384, 7
  %v1386 = vsub.s32 0, %v1385
  %v1387 = vrot.slane %v1382, %v1386
  %v1405 = vunpack.c.l.b16 %v1366
  %v1406 = vunpack.c.l.b16 %v1367
  %v1407 = vunpack.c.l.b16 %v1368
  %v1408 = vunpack.c.l.b16 %v1369
  %v1409 = vunpack.c.l.b16 %v1370
  %v1410 = vunpack.c.l.b16 %v1371
  %v1411 = vunpack.c.l.b16 %v1372
  %v1412 = vunpack.c.l.b16 %v1373
  %v1413 = vunpack.c.l.b16 %v1374
  %v1414 = vunpack.c.l.b16 %v1375
  %v1415 = vunpack.c.l.b16 %v1376
  %v1416 = vunpack.c.l.b16 %v1377
  %v1417 = vunpack.c.l.b16 %v1378
  %v1418 = vunpack.c.l.b16 %v1379
  %v1419 = vunpack.c.l.b16 %v1380
  %v1420 = vunpack.c.l.b16 %v1381
  %v1421 = vpack.c.b16 %v1406, %v1405
  %v1422 = vpack.c.b16 %v1408, %v1407
  %v1423 = vpack.c.b16 %v1410, %v1409
  %v1424 = vpack.c.b16 %v1412, %v1411
  %v1425 = vpack.c.b16 %v1414, %v1413
  %v1426 = vpack.c.b16 %v1416, %v1415
  %v1427 = vpack.c.b16 %v1418, %v1417
  %v1428 = vpack.c.b16 %v1420, %v1419
  %1437 = vmatprep.subr.bf16.mxu0 0
  %1438 = vmatpush1.bf16.msra.mxu0 %v1421
  %1439 = vmatprep.subr.bf16.mxu0 0
  %1440 = vmatpush1.bf16.msra.mxu0 %v1422
  %1441 = vmatprep.subr.bf16.mxu0 0
  %1442 = vmatpush1.bf16.msra.mxu0 %v1423
  %1443 = vmatprep.subr.bf16.mxu0 0
  %1444 = vmatpush1.bf16.msra.mxu0 %v1424
  %1445 = vmatprep.subr.bf16.mxu0 0
  %1446 = vmatpush1.bf16.msra.mxu0 %v1425
  %1447 = vmatprep.subr.bf16.mxu0 0
  %1448 = vmatpush1.bf16.msra.mxu0 %v1426
  %1449 = vmatprep.subr.bf16.mxu0 0
  %1450 = vmatpush1.bf16.msra.mxu0 %v1427
  %1451 = vmatprep.subr.bf16.mxu0 0
  %1452 = vmatpush1.bf16.msra.mxu0 %v1428
  %1453 = vmatprep.subr.bf16.mxu0 0
  %1454 = vmatpush1.bf16.msra.mxu0 0
  %1455 = vmatprep.subr.bf16.mxu0 0
  %1456 = vmatpush1.bf16.msra.mxu0 0
  %1457 = vmatprep.subr.bf16.mxu0 0
  %1458 = vmatpush1.bf16.msra.mxu0 0
  %1459 = vmatprep.subr.bf16.mxu0 0
  %1460 = vmatpush1.bf16.msra.mxu0 0
  %1461 = vmatprep.subr.bf16.mxu0 0
  %1462 = vmatpush1.bf16.msra.mxu0 0
  %1463 = vmatprep.subr.bf16.mxu0 0
  %1464 = vmatpush1.bf16.msra.mxu0 0
  %1465 = vmatprep.subr.bf16.mxu0 0
  %1466 = vmatpush1.bf16.msra.mxu0 0
  %1467 = vmatprep.subr.bf16.mxu0 0
  %1468 = vmatpush1.bf16.msra.mxu0 0
  %1469 = vmatprep.mubr.bf16.mxu0 0
  %1470 = vmatmul.mubr.bf16.gmra.mrb[0].mxu0 %v1365
  %v1471 = vpop.f32.mrb[0].mxu0
  %v1472 = vadd.f32 %v1387, %v1471
  %v1473 = vpop.f32.mrb[0].mxu0
  %v1474 = vpop.f32.mrb[0].mxu0
  %v1475 = vpop.f32.mrb[0].mxu0
  %1476 = vdwg.mxu0
  %v1477 = vxor.u32 %v1472, 2147483648
  %v1478 = vmul.f32 %v1477, 1.442695
  %v1479 = vpow.pop %v1478
  %v1480 = vadd.f32 %v1479, 1.0
  %v1481 = vrcp.pop %v1480
  %v1482 = vmul.f32 1.0, %v1481
  %1483 = vst [vmem:[%s9] sm:$0xff] %v1482
  // Predicated region
  $region38: #{rnn_forward_pallas.1} parent=0 // pred_check
    _
  $region39: #{rnn_forward_pallas.1} parent=0 // pred_check_branch
    %1485 = sbr.rel (0) target = $region41
  $region40: #{rnn_forward_pallas.1} parent=0 // pred_region
    _
  $region41: #{rnn_forward_pallas.1} parent=0 // pred_fallthru
    _
  // Predicated region
  $region42: #{rnn_forward_pallas.1} parent=0 // pred_check
    _
  $region43: #{rnn_forward_pallas.1} parent=0 // pred_check_branch
    %1487 = sbr.rel (0) target = $region45
  $region44: #{rnn_forward_pallas.1} parent=0 // pred_region
    _
  $region45: #{rnn_forward_pallas.1} parent=0 // pred_fallthru
    _

</llo_original>
